<compile_context>
chip_gen: v7x
topology: tpu7x:2x2x1
jax: 0.10.0
libtpu: 0.0.40
codegen_flags: <defaults>
</compile_context>

<pallas_src>
import functools

import jax
import jax.numpy as jnp
from jax import lax
from jax.experimental import pallas as pl
from jax.experimental.pallas import tpu as pltpu

LANE = 128


def _round_up(x, m):
    return (x + m - 1) // m * m


def _choose_row_tile(B, W):
    """Pick Bt so the matmul M-dim (Bt*W) is around one MXU pass while keeping
    >= 2 grid steps (megacore / v7x dual-TC) whenever the batch allows it."""
    target_m = 512
    bt = max(1, min(B, max(1, target_m // max(W, 1))))
    while bt > 1 and (B % bt != 0 or B // bt < 2):
        bt -= 1
    return bt


def _tcn_fused_kernel(x_ref, w_ref, v_ref, *rest, layers, K, W, maxpad, has_ds):
    """All TemporalBlocks fused, for one tile of Bt independent (n, h) rows.

    x_ref : (Bt, maxpad + W, Cp)  causally left-padded input, channels-last,
                                  channels zero-padded to Cp (lane-dense)
    w_ref : (L, K, Cp, Cp)        conv weights, tap-major, zero-padded
    v_ref : (L, 4, Cp)            per-layer [conv bias, bn scale, bn shift, ds bias]
    wd_ref: (Lds, Cp, Cp)         1x1 downsample weights (only if has_ds)
    o_ref : (Bt, W, Cp)           final activation (lane-dense store)
    a_ref : (Bt, maxpad + W, Cp)  VMEM scratch holding the running activation;
                                  the first `maxpad` time steps stay zero so the
                                  causal left-pad of every layer is in place
    """
    if has_ds:
        wd_ref, o_ref, a_ref = rest
    else:
        o_ref, a_ref = rest

    Bt = o_ref.shape[0]
    Cp = o_ref.shape[2]

    a_ref[...] = x_ref[...]  # zero prefix + input, lane-dense

    for l, (dil, pad, ds_idx) in enumerate(layers):
        vl = v_ref[l]                      # (4, Cp)
        base = maxpad - pad

        # Causal dilated conv = K shifted (Bt*W, Cp) x (Cp, Cp) MXU matmuls.
        xj = a_ref[:, pl.ds(base, W), :].reshape(Bt * W, Cp)
        acc = jnp.dot(xj, w_ref[l, 0], preferred_element_type=jnp.float32)
        for j in range(1, K):
            xj = a_ref[:, pl.ds(base + j * dil, W), :].reshape(Bt * W, Cp)
            acc = acc + jnp.dot(xj, w_ref[l, j],
                                preferred_element_type=jnp.float32)

        acc = acc + vl[0:1, :]                      # conv bias
        acc = jnp.maximum(acc, 0.0)                 # ReLU (Dropout = identity, eval)
        acc = acc * vl[1:2, :] + vl[2:3, :]         # BatchNorm2d (eval), folded

        xres = a_ref[:, pl.ds(maxpad, W), :].reshape(Bt * W, Cp)
        if ds_idx is not None:                      # 1x1 downsample residual
            res = jnp.dot(xres, wd_ref[ds_idx],
                          preferred_element_type=jnp.float32) + vl[3:4, :]
        else:                                       # identity residual
            res = xres

        a_ref[:, pl.ds(maxpad, W), :] = (
            jnp.maximum(acc + res, 0.0).reshape(Bt, W, Cp))

    o_ref[...] = a_ref[:, pl.ds(maxpad, W), :]


def temporal_conv_net(x, params, kernel_size):
    """x: [N, H, C0, W]  (PyTorch forward does transpose(1, 2) -> NCHW first).

    Returns [N, C_last, H, W]."""
    N, H, C0, W = x.shape
    L = len(params)
    K = kernel_size
    dils = [2 ** i for i in range(L)]
    pads = [(K - 1) * d for d in dils]
    maxpad = max(pads)
    Wp = W + maxpad

    chans = [C0] + [p["w"].shape[2] for p in params]
    Cout = chans[-1]
    Cp = _round_up(max(chans), LANE)

    # --- pack / zero-pad parameters into a uniform lane-dense layout ---------
    w_all = jnp.zeros((L, K, Cp, Cp), jnp.float32)
    vecs = jnp.zeros((L, 4, Cp), jnp.float32)
    wd_list = []
    layers = []
    for l, p in enumerate(params):
        cin, cout = chans[l], chans[l + 1]
        w_all = w_all.at[l, :, :cin, :cout].set(p["w"])
        vecs = vecs.at[l, 0, :cout].set(p["b"][0])
        vecs = vecs.at[l, 1, :cout].set(p["bn_scale"][0])
        vecs = vecs.at[l, 2, :cout].set(p["bn_shift"][0])
        if "wd" in p:
            ds_idx = len(wd_list)
            wd = jnp.zeros((Cp, Cp), jnp.float32).at[:cin, :cout].set(p["wd"])
            wd_list.append(wd)
            vecs = vecs.at[l, 3, :cout].set(p["bd"][0])
        else:
            ds_idx = None
        layers.append((dils[l], pads[l], ds_idx))
    has_ds = bool(wd_list)

    # --- activations: one transpose + one causal/channel pad at entry only ---
    B = N * H
    xr = jnp.transpose(x, (0, 1, 3, 2)).reshape(B, W, C0)       # [B, W, C0]
    xp = jnp.pad(xr, ((0, 0), (maxpad, 0), (0, Cp - C0)))       # [B, Wp, Cp]

    Bt = _choose_row_tile(B, W)
    grid = (B // Bt,)

    in_specs = [
        pl.BlockSpec((Bt, Wp, Cp), lambda i: (i, 0, 0)),
        pl.BlockSpec((L, K, Cp, Cp), lambda i: (0, 0, 0, 0)),
        pl.BlockSpec((L, 4, Cp), lambda i: (0, 0, 0)),
    ]
    args = [xp, w_all, vecs]
    if has_ds:
        wd_all = jnp.stack(wd_list)                             # (Lds, Cp, Cp)
        in_specs.append(pl.BlockSpec(wd_all.shape, lambda i: (0, 0, 0)))
        args.append(wd_all)

    kernel = functools.partial(
        _tcn_fused_kernel, layers=tuple(layers), K=K, W=W,
        maxpad=maxpad, has_ds=has_ds)

    out = pl.pallas_call(
        kernel,
        out_shape=jax.ShapeDtypeStruct((B, W, Cp), jnp.float32),
        grid=grid,
        in_specs=in_specs,
        out_specs=pl.BlockSpec((Bt, W, Cp), lambda i: (i, 0, 0)),
        scratch_shapes=[pltpu.VMEM((Bt, Wp, Cp), jnp.float32)],
        compiler_params=pltpu.CompilerParams(
            dimension_semantics=("parallel",)),
    )(*args)

    # [B, W, Cp] -> strip channel padding -> [N, Cout, H, W]
    return out[:, :, :Cout].reshape(N, H, W, Cout).transpose(0, 3, 1, 2)


def init_tcn_params(key, channel_layer, kernel_size):
    """Deterministic synthetic parameters mirroring TemporalBlock.__init__."""
    eps = 1e-5
    params = []
    for i in range(len(channel_layer) - 1):
        cin, cout = channel_layer[i], channel_layer[i + 1]
        key, k1, k2, k3, k4 = jax.random.split(key, 5)
        # conv1.weight ~ N(0, 0.01); stored tap-major: w[j, ci, co] = w_torch[co, ci, 0, j]
        w = 0.01 * jax.random.normal(k1, (kernel_size, cin, cout), jnp.float32)
        b = 0.1 * jax.random.normal(k2, (1, cout), jnp.float32)
        # BatchNorm2d default init (eval): gamma=1, beta=0, mean=0, var=1
        gamma = jnp.ones((cout,), jnp.float32)
        beta = jnp.zeros((cout,), jnp.float32)
        rmean = jnp.zeros((cout,), jnp.float32)
        rvar = jnp.ones((cout,), jnp.float32)
        scale = gamma / jnp.sqrt(rvar + eps)
        shift = beta - rmean * scale
        p = {"w": w, "b": b,
             "bn_scale": scale.reshape(1, cout),
             "bn_shift": shift.reshape(1, cout)}
        if cin != cout:  # downsample 1x1 conv, weight ~ N(0, 0.01)
            p["wd"] = 0.01 * jax.random.normal(k3, (cin, cout), jnp.float32)
            p["bd"] = 0.1 * jax.random.normal(k4, (1, cout), jnp.float32)
        params.append(p)
    return params


# ----------------------- pure-JAX reference (check) -------------------------
def reference_tcn(x, params, kernel_size):
    x = jnp.transpose(x, (0, 2, 1, 3))
    for i, p in enumerate(params):
        dilation = 2 ** i
        pad = (kernel_size - 1) * dilation
        K, cin, cout = p["w"].shape
        W = x.shape[-1]
        wt = jnp.transpose(p["w"], (2, 1, 0)).reshape(cout, cin, 1, K)
        y = lax.conv_general_dilated(
            x, wt, window_strides=(1, 1),
            padding=((0, 0), (pad, pad)),
            rhs_dilation=(1, dilation),
            dimension_numbers=("NCHW", "OIHW", "NCHW"))
        y = y + p["b"].reshape(1, cout, 1, 1)
        y = y[..., :W]                                        # Chomp1d
        y = jnp.maximum(y, 0.0)                               # ReLU
        y = y * p["bn_scale"].reshape(1, cout, 1, 1) + \
            p["bn_shift"].reshape(1, cout, 1, 1)              # BN (eval)
        if "wd" in p:
            wdt = jnp.transpose(p["wd"], (1, 0)).reshape(cout, cin, 1, 1)
            res = lax.conv_general_dilated(
                x, wdt, (1, 1), ((0, 0), (0, 0)),
                dimension_numbers=("NCHW", "OIHW", "NCHW")) + \
                p["bd"].reshape(1, cout, 1, 1)
        else:
            res = x
        x = jnp.maximum(y + res, 0.0)
    return x


if __name__ == "__main__":
    key = jax.random.PRNGKey(0)
    channel_layer = [4, 8, 8, 6]      # exercises both downsample / identity residual
    kernel_size = 2
    N, H, W = 2, 4, 16

    kx, kp = jax.random.split(key)
    x = jax.random.normal(kx, (N, H, channel_layer[0], W), jnp.float32)
    params = init_tcn_params(kp, channel_layer, kernel_size)

    out = temporal_conv_net(x, params, kernel_size)
    out = jax.block_until_ready(out)

    ref = reference_tcn(x, params, kernel_size)
    assert out.shape == (N, channel_layer[-1], H, W), out.shape
    assert jnp.allclose(out, ref, atol=1e-5, rtol=1e-5), \
        float(jnp.max(jnp.abs(out - ref)))

    print("KERNEL_OK")
</pallas_src>

<mosaic_0001>
module attributes {stable_mosaic.version = 11 : i64} {
  func.func @_tcn_fused_kernel(%arg0: i32, %arg1: memref<4x20x128xf32, #tpu.memory_space<vmem>>, %arg2: memref<3x2x128x128xf32, #tpu.memory_space<vmem>>, %arg3: memref<3x4x128xf32, #tpu.memory_space<vmem>>, %arg4: memref<2x128x128xf32, #tpu.memory_space<vmem>>, %arg5: memref<4x16x128xf32, #tpu.memory_space<vmem>>, %arg6: memref<4x20x128xf32, #tpu.memory_space<vmem>>) attributes {dimension_semantics = [#tpu.dimension_semantics<parallel>], iteration_bounds = array<i64: 2>, scalar_prefetch = 0 : i64, scratch_operands = 1 : i64, tpu.core_type = #tpu.core_type<tc>, window_params = [{transform_indices = @transform_0, window_bounds = array<i64: 4, 20, 128>}, {pipeline_mode = #tpu.pipeline_mode<synchronous>, transform_indices = @transform_1, window_bounds = array<i64: 3, 2, 128, 128>}, {pipeline_mode = #tpu.pipeline_mode<synchronous>, transform_indices = @transform_2, window_bounds = array<i64: 3, 4, 128>}, {pipeline_mode = #tpu.pipeline_mode<synchronous>, transform_indices = @transform_3, window_bounds = array<i64: 2, 128, 128>}, {transform_indices = @transform_4, window_bounds = array<i64: 4, 16, 128>}]} {
    %c0 = arith.constant 0 : index
    %c0_0 = arith.constant 0 : index
    %c0_1 = arith.constant 0 : index
    %0 = vector.load %arg1[%c0, %c0_0, %c0_1] : memref<4x20x128xf32, #tpu.memory_space<vmem>>, vector<4x20x128xf32>
    %c0_2 = arith.constant 0 : index
    %c0_3 = arith.constant 0 : index
    %c0_4 = arith.constant 0 : index
    %1 = vector.load %arg6[%c0_2, %c0_3, %c0_4] : memref<4x20x128xf32, #tpu.memory_space<vmem>>, vector<4x20x128xf32>
    tpu.vector_store %arg6[%c0_2, %c0_3, %c0_4], %0 {strides = array<i32>} : memref<4x20x128xf32, #tpu.memory_space<vmem>>, vector<4x20x128xf32>,
    %c0_5 = arith.constant 0 : index
    %c0_6 = arith.constant 0 : index
    %c0_7 = arith.constant 0 : index
    %2 = vector.load %arg3[%c0_5, %c0_6, %c0_7] : memref<3x4x128xf32, #tpu.memory_space<vmem>>, vector<1x4x128xf32>
    %3 = vector.shape_cast %2 : vector<1x4x128xf32> to vector<4x128xf32>
    %c0_8 = arith.constant 0 : index
    %c3 = arith.constant 3 : index
    %c0_9 = arith.constant 0 : index
    %4 = vector.load %arg6[%c0_8, %c3, %c0_9] : memref<4x20x128xf32, #tpu.memory_space<vmem>>, vector<4x16x128xf32>
    %5 = vector.shape_cast %4 : vector<4x16x128xf32> to vector<64x128xf32>
    %c0_10 = arith.constant 0 : index
    %c0_11 = arith.constant 0 : index
    %c0_12 = arith.constant 0 : index
    %c0_13 = arith.constant 0 : index
    %6 = vector.load %arg2[%c0_10, %c0_11, %c0_12, %c0_13] : memref<3x2x128x128xf32, #tpu.memory_space<vmem>>, vector<1x1x128x128xf32>
    %7 = vector.shape_cast %6 : vector<1x1x128x128xf32> to vector<128x128xf32>
    %cst = arith.constant dense<0.000000e+00> : vector<64x128xf32>
    %8 = tpu.matmul %5, %7, %cst {dimension_numbers = #tpu.dot_dimension_numbers<[1], [0], [0], [1], [0, 0, 1, 1], [], []>} : vector<64x128xf32>, vector<128x128xf32>, vector<64x128xf32> -> vector<64x128xf32>
    %c0_14 = arith.constant 0 : index
    %c4 = arith.constant 4 : index
    %c0_15 = arith.constant 0 : index
    %9 = vector.load %arg6[%c0_14, %c4, %c0_15] : memref<4x20x128xf32, #tpu.memory_space<vmem>>, vector<4x16x128xf32>
    %10 = vector.shape_cast %9 : vector<4x16x128xf32> to vector<64x128xf32>
    %c0_16 = arith.constant 0 : index
    %c1 = arith.constant 1 : index
    %c0_17 = arith.constant 0 : index
    %c0_18 = arith.constant 0 : index
    %11 = vector.load %arg2[%c0_16, %c1, %c0_17, %c0_18] : memref<3x2x128x128xf32, #tpu.memory_space<vmem>>, vector<1x1x128x128xf32>
    %12 = vector.shape_cast %11 : vector<1x1x128x128xf32> to vector<128x128xf32>
    %cst_19 = arith.constant dense<0.000000e+00> : vector<64x128xf32>
    %13 = tpu.matmul %10, %12, %cst_19 {dimension_numbers = #tpu.dot_dimension_numbers<[1], [0], [0], [1], [0, 0, 1, 1], [], []>} : vector<64x128xf32>, vector<128x128xf32>, vector<64x128xf32> -> vector<64x128xf32>
    %14 = arith.addf %8, %13 : vector<64x128xf32>
    %15 = vector.extract_strided_slice %3 {offsets = [0, 0], sizes = [1, 128], strides = [1, 1]} : vector<4x128xf32> to vector<1x128xf32>
    %16 = vector.broadcast %15 : vector<1x128xf32> to vector<64x128xf32>
    %17 = arith.addf %14, %16 : vector<64x128xf32>
    %cst_20 = arith.constant 0.000000e+00 : f32
    %18 = vector.broadcast %cst_20 : f32 to vector<64x128xf32>
    %19 = arith.maximumf %17, %18 : vector<64x128xf32>
    %20 = vector.extract_strided_slice %3 {offsets = [1, 0], sizes = [1, 128], strides = [1, 1]} : vector<4x128xf32> to vector<1x128xf32>
    %21 = vector.broadcast %20 : vector<1x128xf32> to vector<64x128xf32>
    %22 = arith.mulf %19, %21 : vector<64x128xf32>
    %23 = vector.extract_strided_slice %3 {offsets = [2, 0], sizes = [1, 128], strides = [1, 1]} : vector<4x128xf32> to vector<1x128xf32>
    %24 = vector.broadcast %23 : vector<1x128xf32> to vector<64x128xf32>
    %25 = arith.addf %22, %24 : vector<64x128xf32>
    %c0_21 = arith.constant 0 : index
    %c4_22 = arith.constant 4 : index
    %c0_23 = arith.constant 0 : index
    %26 = vector.load %arg6[%c0_21, %c4_22, %c0_23] : memref<4x20x128xf32, #tpu.memory_space<vmem>>, vector<4x16x128xf32>
    %27 = vector.shape_cast %26 : vector<4x16x128xf32> to vector<64x128xf32>
    %c0_24 = arith.constant 0 : index
    %c0_25 = arith.constant 0 : index
    %c0_26 = arith.constant 0 : index
    %28 = vector.load %arg4[%c0_24, %c0_25, %c0_26] : memref<2x128x128xf32, #tpu.memory_space<vmem>>, vector<1x128x128xf32>
    %29 = vector.shape_cast %28 : vector<1x128x128xf32> to vector<128x128xf32>
    %cst_27 = arith.constant dense<0.000000e+00> : vector<64x128xf32>
    %30 = tpu.matmul %27, %29, %cst_27 {dimension_numbers = #tpu.dot_dimension_numbers<[1], [0], [0], [1], [0, 0, 1, 1], [], []>} : vector<64x128xf32>, vector<128x128xf32>, vector<64x128xf32> -> vector<64x128xf32>
    %31 = vector.extract_strided_slice %3 {offsets = [3, 0], sizes = [1, 128], strides = [1, 1]} : vector<4x128xf32> to vector<1x128xf32>
    %32 = vector.broadcast %31 : vector<1x128xf32> to vector<64x128xf32>
    %33 = arith.addf %30, %32 : vector<64x128xf32>
    %34 = arith.addf %25, %33 : vector<64x128xf32>
    %cst_28 = arith.constant 0.000000e+00 : f32
    %35 = vector.broadcast %cst_28 : f32 to vector<64x128xf32>
    %36 = arith.maximumf %34, %35 : vector<64x128xf32>
    %37 = vector.shape_cast %36 : vector<64x128xf32> to vector<4x16x128xf32>
    %c0_29 = arith.constant 0 : index
    %c4_30 = arith.constant 4 : index
    %c0_31 = arith.constant 0 : index
    %38 = vector.load %arg6[%c0_29, %c4_30, %c0_31] : memref<4x20x128xf32, #tpu.memory_space<vmem>>, vector<4x16x128xf32>
    tpu.vector_store %arg6[%c0_29, %c4_30, %c0_31], %37 {strides = array<i32>} : memref<4x20x128xf32, #tpu.memory_space<vmem>>, vector<4x16x128xf32>,
    %c1_32 = arith.constant 1 : index
    %c0_33 = arith.constant 0 : index
    %c0_34 = arith.constant 0 : index
    %39 = vector.load %arg3[%c1_32, %c0_33, %c0_34] : memref<3x4x128xf32, #tpu.memory_space<vmem>>, vector<1x4x128xf32>
    %40 = vector.shape_cast %39 : vector<1x4x128xf32> to vector<4x128xf32>
    %c0_35 = arith.constant 0 : index
    %c2 = arith.constant 2 : index
    %c0_36 = arith.constant 0 : index
    %41 = vector.load %arg6[%c0_35, %c2, %c0_36] : memref<4x20x128xf32, #tpu.memory_space<vmem>>, vector<4x16x128xf32>
    %42 = vector.shape_cast %41 : vector<4x16x128xf32> to vector<64x128xf32>
    %c1_37 = arith.constant 1 : index
    %c0_38 = arith.constant 0 : index
    %c0_39 = arith.constant 0 : index
    %c0_40 = arith.constant 0 : index
    %43 = vector.load %arg2[%c1_37, %c0_38, %c0_39, %c0_40] : memref<3x2x128x128xf32, #tpu.memory_space<vmem>>, vector<1x1x128x128xf32>
    %44 = vector.shape_cast %43 : vector<1x1x128x128xf32> to vector<128x128xf32>
    %cst_41 = arith.constant dense<0.000000e+00> : vector<64x128xf32>
    %45 = tpu.matmul %42, %44, %cst_41 {dimension_numbers = #tpu.dot_dimension_numbers<[1], [0], [0], [1], [0, 0, 1, 1], [], []>} : vector<64x128xf32>, vector<128x128xf32>, vector<64x128xf32> -> vector<64x128xf32>
    %c0_42 = arith.constant 0 : index
    %c4_43 = arith.constant 4 : index
    %c0_44 = arith.constant 0 : index
    %46 = vector.load %arg6[%c0_42, %c4_43, %c0_44] : memref<4x20x128xf32, #tpu.memory_space<vmem>>, vector<4x16x128xf32>
    %47 = vector.shape_cast %46 : vector<4x16x128xf32> to vector<64x128xf32>
    %c1_45 = arith.constant 1 : index
    %c1_46 = arith.constant 1 : index
    %c0_47 = arith.constant 0 : index
    %c0_48 = arith.constant 0 : index
    %48 = vector.load %arg2[%c1_45, %c1_46, %c0_47, %c0_48] : memref<3x2x128x128xf32, #tpu.memory_space<vmem>>, vector<1x1x128x128xf32>
    %49 = vector.shape_cast %48 : vector<1x1x128x128xf32> to vector<128x128xf32>
    %cst_49 = arith.constant dense<0.000000e+00> : vector<64x128xf32>
    %50 = tpu.matmul %47, %49, %cst_49 {dimension_numbers = #tpu.dot_dimension_numbers<[1], [0], [0], [1], [0, 0, 1, 1], [], []>} : vector<64x128xf32>, vector<128x128xf32>, vector<64x128xf32> -> vector<64x128xf32>
    %51 = arith.addf %45, %50 : vector<64x128xf32>
    %52 = vector.extract_strided_slice %40 {offsets = [0, 0], sizes = [1, 128], strides = [1, 1]} : vector<4x128xf32> to vector<1x128xf32>
    %53 = vector.broadcast %52 : vector<1x128xf32> to vector<64x128xf32>
    %54 = arith.addf %51, %53 : vector<64x128xf32>
    %cst_50 = arith.constant 0.000000e+00 : f32
    %55 = vector.broadcast %cst_50 : f32 to vector<64x128xf32>
    %56 = arith.maximumf %54, %55 : vector<64x128xf32>
    %57 = vector.extract_strided_slice %40 {offsets = [1, 0], sizes = [1, 128], strides = [1, 1]} : vector<4x128xf32> to vector<1x128xf32>
    %58 = vector.broadcast %57 : vector<1x128xf32> to vector<64x128xf32>
    %59 = arith.mulf %56, %58 : vector<64x128xf32>
    %60 = vector.extract_strided_slice %40 {offsets = [2, 0], sizes = [1, 128], strides = [1, 1]} : vector<4x128xf32> to vector<1x128xf32>
    %61 = vector.broadcast %60 : vector<1x128xf32> to vector<64x128xf32>
    %62 = arith.addf %59, %61 : vector<64x128xf32>
    %c0_51 = arith.constant 0 : index
    %c4_52 = arith.constant 4 : index
    %c0_53 = arith.constant 0 : index
    %63 = vector.load %arg6[%c0_51, %c4_52, %c0_53] : memref<4x20x128xf32, #tpu.memory_space<vmem>>, vector<4x16x128xf32>
    %64 = vector.shape_cast %63 : vector<4x16x128xf32> to vector<64x128xf32>
    %65 = arith.addf %62, %64 : vector<64x128xf32>
    %cst_54 = arith.constant 0.000000e+00 : f32
    %66 = vector.broadcast %cst_54 : f32 to vector<64x128xf32>
    %67 = arith.maximumf %65, %66 : vector<64x128xf32>
    %68 = vector.shape_cast %67 : vector<64x128xf32> to vector<4x16x128xf32>
    %c0_55 = arith.constant 0 : index
    %c4_56 = arith.constant 4 : index
    %c0_57 = arith.constant 0 : index
    %69 = vector.load %arg6[%c0_55, %c4_56, %c0_57] : memref<4x20x128xf32, #tpu.memory_space<vmem>>, vector<4x16x128xf32>
    tpu.vector_store %arg6[%c0_55, %c4_56, %c0_57], %68 {strides = array<i32>} : memref<4x20x128xf32, #tpu.memory_space<vmem>>, vector<4x16x128xf32>,
    %c2_58 = arith.constant 2 : index
    %c0_59 = arith.constant 0 : index
    %c0_60 = arith.constant 0 : index
    %70 = vector.load %arg3[%c2_58, %c0_59, %c0_60] : memref<3x4x128xf32, #tpu.memory_space<vmem>>, vector<1x4x128xf32>
    %71 = vector.shape_cast %70 : vector<1x4x128xf32> to vector<4x128xf32>
    %c0_61 = arith.constant 0 : index
    %c0_62 = arith.constant 0 : index
    %c0_63 = arith.constant 0 : index
    %72 = vector.load %arg6[%c0_61, %c0_62, %c0_63] : memref<4x20x128xf32, #tpu.memory_space<vmem>>, vector<4x16x128xf32>
    %73 = vector.shape_cast %72 : vector<4x16x128xf32> to vector<64x128xf32>
    %c2_64 = arith.constant 2 : index
    %c0_65 = arith.constant 0 : index
    %c0_66 = arith.constant 0 : index
    %c0_67 = arith.constant 0 : index
    %74 = vector.load %arg2[%c2_64, %c0_65, %c0_66, %c0_67] : memref<3x2x128x128xf32, #tpu.memory_space<vmem>>, vector<1x1x128x128xf32>
    %75 = vector.shape_cast %74 : vector<1x1x128x128xf32> to vector<128x128xf32>
    %cst_68 = arith.constant dense<0.000000e+00> : vector<64x128xf32>
    %76 = tpu.matmul %73, %75, %cst_68 {dimension_numbers = #tpu.dot_dimension_numbers<[1], [0], [0], [1], [0, 0, 1, 1], [], []>} : vector<64x128xf32>, vector<128x128xf32>, vector<64x128xf32> -> vector<64x128xf32>
    %c0_69 = arith.constant 0 : index
    %c4_70 = arith.constant 4 : index
    %c0_71 = arith.constant 0 : index
    %77 = vector.load %arg6[%c0_69, %c4_70, %c0_71] : memref<4x20x128xf32, #tpu.memory_space<vmem>>, vector<4x16x128xf32>
    %78 = vector.shape_cast %77 : vector<4x16x128xf32> to vector<64x128xf32>
    %c2_72 = arith.constant 2 : index
    %c1_73 = arith.constant 1 : index
    %c0_74 = arith.constant 0 : index
    %c0_75 = arith.constant 0 : index
    %79 = vector.load %arg2[%c2_72, %c1_73, %c0_74, %c0_75] : memref<3x2x128x128xf32, #tpu.memory_space<vmem>>, vector<1x1x128x128xf32>
    %80 = vector.shape_cast %79 : vector<1x1x128x128xf32> to vector<128x128xf32>
    %cst_76 = arith.constant dense<0.000000e+00> : vector<64x128xf32>
    %81 = tpu.matmul %78, %80, %cst_76 {dimension_numbers = #tpu.dot_dimension_numbers<[1], [0], [0], [1], [0, 0, 1, 1], [], []>} : vector<64x128xf32>, vector<128x128xf32>, vector<64x128xf32> -> vector<64x128xf32>
    %82 = arith.addf %76, %81 : vector<64x128xf32>
    %83 = vector.extract_strided_slice %71 {offsets = [0, 0], sizes = [1, 128], strides = [1, 1]} : vector<4x128xf32> to vector<1x128xf32>
    %84 = vector.broadcast %83 : vector<1x128xf32> to vector<64x128xf32>
    %85 = arith.addf %82, %84 : vector<64x128xf32>
    %cst_77 = arith.constant 0.000000e+00 : f32
    %86 = vector.broadcast %cst_77 : f32 to vector<64x128xf32>
    %87 = arith.maximumf %85, %86 : vector<64x128xf32>
    %88 = vector.extract_strided_slice %71 {offsets = [1, 0], sizes = [1, 128], strides = [1, 1]} : vector<4x128xf32> to vector<1x128xf32>
    %89 = vector.broadcast %88 : vector<1x128xf32> to vector<64x128xf32>
    %90 = arith.mulf %87, %89 : vector<64x128xf32>
    %91 = vector.extract_strided_slice %71 {offsets = [2, 0], sizes = [1, 128], strides = [1, 1]} : vector<4x128xf32> to vector<1x128xf32>
    %92 = vector.broadcast %91 : vector<1x128xf32> to vector<64x128xf32>
    %93 = arith.addf %90, %92 : vector<64x128xf32>
    %c0_78 = arith.constant 0 : index
    %c4_79 = arith.constant 4 : index
    %c0_80 = arith.constant 0 : index
    %94 = vector.load %arg6[%c0_78, %c4_79, %c0_80] : memref<4x20x128xf32, #tpu.memory_space<vmem>>, vector<4x16x128xf32>
    %95 = vector.shape_cast %94 : vector<4x16x128xf32> to vector<64x128xf32>
    %c1_81 = arith.constant 1 : index
    %c0_82 = arith.constant 0 : index
    %c0_83 = arith.constant 0 : index
    %96 = vector.load %arg4[%c1_81, %c0_82, %c0_83] : memref<2x128x128xf32, #tpu.memory_space<vmem>>, vector<1x128x128xf32>
    %97 = vector.shape_cast %96 : vector<1x128x128xf32> to vector<128x128xf32>
    %cst_84 = arith.constant dense<0.000000e+00> : vector<64x128xf32>
    %98 = tpu.matmul %95, %97, %cst_84 {dimension_numbers = #tpu.dot_dimension_numbers<[1], [0], [0], [1], [0, 0, 1, 1], [], []>} : vector<64x128xf32>, vector<128x128xf32>, vector<64x128xf32> -> vector<64x128xf32>
    %99 = vector.extract_strided_slice %71 {offsets = [3, 0], sizes = [1, 128], strides = [1, 1]} : vector<4x128xf32> to vector<1x128xf32>
    %100 = vector.broadcast %99 : vector<1x128xf32> to vector<64x128xf32>
    %101 = arith.addf %98, %100 : vector<64x128xf32>
    %102 = arith.addf %93, %101 : vector<64x128xf32>
    %cst_85 = arith.constant 0.000000e+00 : f32
    %103 = vector.broadcast %cst_85 : f32 to vector<64x128xf32>
    %104 = arith.maximumf %102, %103 : vector<64x128xf32>
    %105 = vector.shape_cast %104 : vector<64x128xf32> to vector<4x16x128xf32>
    %c0_86 = arith.constant 0 : index
    %c4_87 = arith.constant 4 : index
    %c0_88 = arith.constant 0 : index
    %106 = vector.load %arg6[%c0_86, %c4_87, %c0_88] : memref<4x20x128xf32, #tpu.memory_space<vmem>>, vector<4x16x128xf32>
    tpu.vector_store %arg6[%c0_86, %c4_87, %c0_88], %105 {strides = array<i32>} : memref<4x20x128xf32, #tpu.memory_space<vmem>>, vector<4x16x128xf32>,
    %c0_89 = arith.constant 0 : index
    %c4_90 = arith.constant 4 : index
    %c0_91 = arith.constant 0 : index
    %107 = vector.load %arg6[%c0_89, %c4_90, %c0_91] : memref<4x20x128xf32, #tpu.memory_space<vmem>>, vector<4x16x128xf32>
    %c0_92 = arith.constant 0 : index
    %c0_93 = arith.constant 0 : index
    %c0_94 = arith.constant 0 : index
    %108 = vector.load %arg5[%c0_92, %c0_93, %c0_94] : memref<4x16x128xf32, #tpu.memory_space<vmem>>, vector<4x16x128xf32>
    tpu.vector_store %arg5[%c0_92, %c0_93, %c0_94], %107 {strides = array<i32>} : memref<4x16x128xf32, #tpu.memory_space<vmem>>, vector<4x16x128xf32>,
    return
  }
  func.func @transform_0(%arg0: i32) -> (i32, i32, i32) {
    %c0_i32 = arith.constant 0 : i32
    %c0_i32_0 = arith.constant 0 : i32
    %c0_i32_1 = arith.constant 0 : i32
    return %arg0, %c0_i32, %c0_i32_0 : i32, i32, i32
  }
  func.func @transform_1(%arg0: i32) -> (i32, i32, i32, i32) {
    %c0_i32 = arith.constant 0 : i32
    %c0_i32_0 = arith.constant 0 : i32
    %c0_i32_1 = arith.constant 0 : i32
    %c0_i32_2 = arith.constant 0 : i32
    %c0_i32_3 = arith.constant 0 : i32
    return %c0_i32, %c0_i32_0, %c0_i32_1, %c0_i32_2 : i32, i32, i32, i32
  }
  func.func @transform_2(%arg0: i32) -> (i32, i32, i32) {
    %c0_i32 = arith.constant 0 : i32
    %c0_i32_0 = arith.constant 0 : i32
    %c0_i32_1 = arith.constant 0 : i32
    %c0_i32_2 = arith.constant 0 : i32
    return %c0_i32, %c0_i32_0, %c0_i32_1 : i32, i32, i32
  }
  func.func @transform_3(%arg0: i32) -> (i32, i32, i32) {
    %c0_i32 = arith.constant 0 : i32
    %c0_i32_0 = arith.constant 0 : i32
    %c0_i32_1 = arith.constant 0 : i32
    %c0_i32_2 = arith.constant 0 : i32
    return %c0_i32, %c0_i32_0, %c0_i32_1 : i32, i32, i32
  }
  func.func @transform_4(%arg0: i32) -> (i32, i32, i32) {
    %c0_i32 = arith.constant 0 : i32
    %c0_i32_0 = arith.constant 0 : i32
    %c0_i32_1 = arith.constant 0 : i32
    return %arg0, %c0_i32, %c0_i32_0 : i32, i32, i32
  }
}

</mosaic_0001>

<llo_original>
// kernel: tpu_custom_call.1
$region0: #{tpu_custom_call.1}
  #allocation0 [shape = 'u32[]', space=smem, size = 0x4, offset = 0x4, fixed_abs, tag = 'smem constant byte address 0x4 - core index']
  #allocation1 [shape = 'u32[144,128]{1,0:T(1,128)}', space=vmem, size = 0x12000, scoped, tag = 'internal scratch']
  #allocation2 [shape = 'f32[4,20,128]{2,1,0:T(8,128)}', space=vmem, size = 0xc000, scoped, tag = 'scratch operand']
  %s0 = inlined_call_operand.vmem [shape: f32[8,20,128], index: 0, kind: input, shape index: {}]
  %s1 = inlined_call_operand.hbm [shape: f32[3,2,128,128], index: 1, kind: input, shape index: {}]
  %s2 = inlined_call_operand.vmem [shape: f32[3,4,128], index: 2, kind: input, shape index: {}]
  %s3 = inlined_call_operand.vmem [shape: f32[2,128,128], index: 3, kind: input, shape index: {}]
  %s4 = inlined_call_operand.hbm [shape: f32[8,16,128], index: 4, kind: output, shape index: {}]
  %s5 = sld [smem:[#allocation0]]
  $region53: #{tpu_custom_call.1} parent=0
    _
  %s7 = ssub.s32 1, %s5
  %s8 = scalar_select 0, %s7, %s5
  $region1: #{tpu_custom_call.1} parent=0
    #allocation3 [shape = 'u8[393216]{0}', space=vmem, size = 0x60000, scoped, tag = 'input window, operand 1, single buffered']
    #allocation4 [shape = 's32[2]{0}', space=sflag, size = 0x8, scoped, tag = 'scoped memory for tpu_custom_call.1']
    #allocation5 [shape = 's32[2]{0}', space=sflag, size = 0x8, scoped, tag = 'scoped memory for tpu_custom_call.1']
    #allocation6 [shape = 'u8[65536]{0}', space=vmem, size = 0x10000, scoped, tag = 'output window, operand 0']
    %9 = vsyncpa [#allocation4], 0
    %10 = vsyncpa [#allocation5], 0
    %s11 = scalar_lea.sflag [#allocation5], 1
    %12 = vsyncpa %s11, 0
    loop: start=0, step=1, limit=4
    $region2: #{tpu_custom_call.1} parent=1 // loop_pre_header
      _
    $region3: #{tpu_custom_call.1} parent=1 // loop_header
      %s14 = sphi 0, %s18
      %p15 = scmp.ge.s32.totalorder %s14, 4
      %s24 = sphi 0, %s26
      %s27 = sphi 0, %s24
      %s28 = sphi 0, %s27
      %s44 = sphi 0, %s28
      %s48 = sphi 0, %s48
      %s50 = sphi 0, %s48
      %s51 = sphi 0, %s50
      %s65 = sphi 0, %s51
      %s69 = sphi 0, %s69
      %s71 = sphi 0, %s69
      %s72 = sphi 0, %s71
      %s86 = sphi 0, %s72
      %s90 = sphi 0, %s90
      %s92 = sphi 0, %s90
      %s93 = sphi 0, %s92
      %s107 = sphi 0, %s93
      %s113 = sphi 0, %s115
      %s116 = sphi 0, %s113
      %s117 = sphi 0, %s116
      %s133 = sphi 0, %s117
    $region4: #{tpu_custom_call.1} parent=1 // loop_header_branch
      %17 = sbr.rel (%p15) target = $region8
    $region5: #{tpu_custom_call.1} parent=1 // loop_body
      %s19 = ssub.s32 %s14, 1
      %s20 = ssub.s32 %s14, 2
      %s21 = sadd.s32 %s14, 1
      %s22 = ssub.s32 %s14, %s21
      %p23 = scmp.eq.s32.totalorder %s22, 0
      %s25 = sadd.s32 %s24, 1
      %s26 = scalar_select %p23, %s24, %s25
      %p29 = pneg %p23
      %p30 = scmp.eq.s32.totalorder %s14, 1
      %p31 = por %p29, %p30
      %p32 = scmp.ne.s32.totalorder %s24, %s27
      %p33 = scmp.eq.s32.totalorder %s14, 0
      %p34 = por %p32, %p33
      %p35 = scmp.ne.s32.totalorder %s24, %s27
      %p36 = scmp.eq.s32.totalorder %s19, 1
      %p37 = por %p35, %p36
      %p38 = scmp.ne.s32.totalorder %s27, %s28
      %p39 = scmp.eq.s32.totalorder %s19, 0
      %p40 = por %p38, %p39
      %p41 = scmp.ne.s32.totalorder %s27, %s28
      %p42 = scmp.eq.s32.totalorder %s20, 1
      %p43 = por %p41, %p42
      %p45 = scmp.ne.s32.totalorder %s28, %s44
      %p46 = scmp.eq.s32.totalorder %s20, 0
      %p47 = por %p45, %p46
      %s49 = sadd.s32 %s48, 1
      %p52 = scmp.eq.s32.totalorder %s14, 1
      %p53 = scmp.ne.s32.totalorder %s48, %s50
      %p54 = scmp.eq.s32.totalorder %s14, 0
      %p55 = por %p53, %p54
      %p56 = scmp.ne.s32.totalorder %s48, %s50
      %p57 = scmp.eq.s32.totalorder %s19, 1
      %p58 = por %p56, %p57
      %p59 = scmp.ne.s32.totalorder %s50, %s51
      %p60 = scmp.eq.s32.totalorder %s19, 0
      %p61 = por %p59, %p60
      %p62 = scmp.ne.s32.totalorder %s50, %s51
      %p63 = scmp.eq.s32.totalorder %s20, 1
      %p64 = por %p62, %p63
      %p66 = scmp.ne.s32.totalorder %s51, %s65
      %p67 = scmp.eq.s32.totalorder %s20, 0
      %p68 = por %p66, %p67
      %s70 = sadd.s32 %s69, 1
      %p73 = scmp.eq.s32.totalorder %s14, 1
      %p74 = scmp.ne.s32.totalorder %s69, %s71
      %p75 = scmp.eq.s32.totalorder %s14, 0
      %p76 = por %p74, %p75
      %p77 = scmp.ne.s32.totalorder %s69, %s71
      %p78 = scmp.eq.s32.totalorder %s19, 1
      %p79 = por %p77, %p78
      %p80 = scmp.ne.s32.totalorder %s71, %s72
      %p81 = scmp.eq.s32.totalorder %s19, 0
      %p82 = por %p80, %p81
      %p83 = scmp.ne.s32.totalorder %s71, %s72
      %p84 = scmp.eq.s32.totalorder %s20, 1
      %p85 = por %p83, %p84
      %p87 = scmp.ne.s32.totalorder %s72, %s86
      %p88 = scmp.eq.s32.totalorder %s20, 0
      %p89 = por %p87, %p88
      %s91 = sadd.s32 %s90, 1
      %p94 = scmp.eq.s32.totalorder %s14, 1
      %p95 = scmp.ne.s32.totalorder %s90, %s92
      %p96 = scmp.eq.s32.totalorder %s14, 0
      %p97 = por %p95, %p96
      %p98 = scmp.ne.s32.totalorder %s90, %s92
      %p99 = scmp.eq.s32.totalorder %s19, 1
      %p100 = por %p98, %p99
      %p101 = scmp.ne.s32.totalorder %s92, %s93
      %p102 = scmp.eq.s32.totalorder %s19, 0
      %p103 = por %p101, %p102
      %p104 = scmp.ne.s32.totalorder %s92, %s93
      %p105 = scmp.eq.s32.totalorder %s20, 1
      %p106 = por %p104, %p105
      %p108 = scmp.ne.s32.totalorder %s93, %s107
      %p109 = scmp.eq.s32.totalorder %s20, 0
      %p110 = por %p108, %p109
      %s111 = ssub.s32 %s14, %s21
      %p112 = scmp.eq.s32.totalorder %s111, 0
      %s114 = sadd.s32 %s113, 1
      %s115 = scalar_select %p112, %s113, %s114
      %p118 = pneg %p112
      %p119 = scmp.eq.s32.totalorder %s14, 1
      %p120 = por %p118, %p119
      %p121 = scmp.ne.s32.totalorder %s113, %s116
      %p122 = scmp.eq.s32.totalorder %s14, 0
      %p123 = por %p121, %p122
      %p124 = scmp.ne.s32.totalorder %s113, %s116
      %p125 = scmp.eq.s32.totalorder %s19, 1
      %p126 = por %p124, %p125
      %p127 = scmp.ne.s32.totalorder %s116, %s117
      %p128 = scmp.eq.s32.totalorder %s19, 0
      %p129 = por %p127, %p128
      %p130 = scmp.ne.s32.totalorder %s116, %s117
      %p131 = scmp.eq.s32.totalorder %s20, 1
      %p132 = por %p130, %p131
      %p134 = scmp.ne.s32.totalorder %s117, %s133
      %p135 = scmp.eq.s32.totalorder %s20, 0
      %p136 = por %p134, %p135
      %p137 = scmp.le.s32.totalorder 1, %s14
      %p138 = scmp.lt.s32.totalorder %s14, 3
      %p139 = pnand %p137, %p138
      %p140 = pneg %p139
      // Predicated region
      $region9: #{tpu_custom_call.1} parent=5 // pred_check
        _
      $region10: #{tpu_custom_call.1} parent=5 // pred_check_branch
        %142 = sbr.rel (%p139) target = $region12
      $region11: #{tpu_custom_call.1} parent=5 // pred_region
        %s143 = ssub.s32 %s14, 1
        // Predicated region
        $region13: #{tpu_custom_call.1} parent=11 // pred_check
          %p144 = pneg %p61
        $region14: #{tpu_custom_call.1} parent=11 // pred_check_branch
          %146 = sbr.rel (%p144) target = $region16
        $region15: #{tpu_custom_call.1} parent=11 // pred_region
          %s148 = ssub.s32 12288, 12288
          %149 = vsyncadd [#allocation4], %s148
          %s150 = sshll.u32 [#allocation3], 4
          %s151 = int_to_ptr.vmem [resolvable:$true] %s150
          %156 = dma.hbm_to_vmem [thread:$0]  %s1, 12288, %s151, [#allocation4], 128, 128, 8
        $region16: #{tpu_custom_call.1} parent=11 // pred_fallthru
          _
        // Predicated region
        $region17: #{tpu_custom_call.1} parent=11 // pred_check
          %p157 = pneg %p82
        $region18: #{tpu_custom_call.1} parent=11 // pred_check_branch
          %159 = sbr.rel (%p157) target = $region20
        $region19: #{tpu_custom_call.1} parent=11 // pred_region
          _
        $region20: #{tpu_custom_call.1} parent=11 // pred_fallthru
          _
        // Predicated region
        $region21: #{tpu_custom_call.1} parent=11 // pred_check
          %p160 = pneg %p103
        $region22: #{tpu_custom_call.1} parent=11 // pred_check_branch
          %162 = sbr.rel (%p160) target = $region24
        $region23: #{tpu_custom_call.1} parent=11 // pred_region
          _
        $region24: #{tpu_custom_call.1} parent=11 // pred_fallthru
          _
      $region12: #{tpu_custom_call.1} parent=5 // pred_fallthru
        _
      %p163 = scmp.lt.s32.totalorder %s14, 2
      // Predicated region
      $region25: #{tpu_custom_call.1} parent=5 // pred_check
        %p164 = pneg %p163
      $region26: #{tpu_custom_call.1} parent=5 // pred_check_branch
        %166 = sbr.rel (%p164) target = $region28
      $region27: #{tpu_custom_call.1} parent=5 // pred_region
        // Predicated region
        $region29: #{tpu_custom_call.1} parent=27 // pred_check
          %p167 = pneg %p34
        $region30: #{tpu_custom_call.1} parent=27 // pred_check_branch
          %169 = sbr.rel (%p167) target = $region32
        $region31: #{tpu_custom_call.1} parent=27 // pred_region
          %s170 = smul.u32 4, %s14
          %p171 = scmp.lt.s32.totalorder %s170, 7
          %s172 = scalar_select %p171, %s170, 7
          %s173 = smul.addr %s172, 3
          %s174 = smul.addr %s173, 8
          %s175 = scalar_lea.vmem %s0, %s174
          %s176 = smul.u32 4, %s14
        $region32: #{tpu_custom_call.1} parent=27 // pred_fallthru
          _
      $region28: #{tpu_custom_call.1} parent=5 // pred_fallthru
        _
      %p177 = scmp.le.s32.totalorder 1, %s14
      %p178 = scmp.lt.s32.totalorder %s14, 3
      %p179 = pnand %p177, %p178
      %p180 = pneg %p179
      // Predicated region
      $region33: #{tpu_custom_call.1} parent=5 // pred_check
        _
      $region34: #{tpu_custom_call.1} parent=5 // pred_check_branch
        %182 = sbr.rel (%p179) target = $region36
      $region35: #{tpu_custom_call.1} parent=5 // pred_region
        %s183 = ssub.s32 %s14, 1
        // Predicated region
        $region37: #{tpu_custom_call.1} parent=35 // pred_check
          %p184 = pneg %p61
        $region38: #{tpu_custom_call.1} parent=35 // pred_check_branch
          %186 = sbr.rel (%p184) target = $region40
        $region39: #{tpu_custom_call.1} parent=35 // pred_region
          %187 = dma.done [#allocation4], 12288
        $region40: #{tpu_custom_call.1} parent=35 // pred_fallthru
          _
        %s188 = smul.u32 4, %s19
        %p189 = scmp.lt.s32.totalorder %s188, 7
        %s190 = scalar_select %p189, %s188, 7
        %s191 = smul.addr %s190, 3
        %s192 = smul.addr %s191, 8
        %s193 = scalar_lea.vmem %s0, %s192
        %p194 = pneg %p40
        %p195 = pneg %p37
        %p196 = pneg %p61
        %p197 = pneg %p58
        %p198 = pneg %p82
        %p199 = pneg %p79
        %p200 = pneg %p103
        %p201 = pneg %p100
        %p202 = pneg %p129
        %p203 = pneg %p126
        %s204 = sand.u32 %s116, 1
        %s205 = scalar_lea.sflag [#allocation5], %s204
        %s206 = sand.u32 %s116, 1
        %s207 = smul.addr %s206, 64
        %s208 = scalar_lea.vmem [#allocation6], %s207
        %s209 = smul.u32 4, %s19
        %p210 = scmp.lt.s32.totalorder %s209, 7
        %s211 = scalar_select %p210, %s209, 7
        %s212 = smul.addr %s211, 3
        %s213 = smul.addr %s212, 8
        %s214 = scalar_lea.vmem %s0, %s213
        %s215 = smul.u32 4, %s19
        %s216 = smul.u32 4, %s19
        %v217 = vld [vmem:[%s214] sm:$0xff]
        %v218 = vld [vmem:[%s214 + $0x8] sm:$0xff]
        %v219 = vld [vmem:[%s214 + $0x10] sm:$0xf]
        %v220 = vld [vmem:[%s214 + $0x18] sm:$0xff]
        %v221 = vld [vmem:[%s214 + $0x20] sm:$0xff]
        %v222 = vld [vmem:[%s214 + $0x28] sm:$0xf]
        %v223 = vld [vmem:[%s214 + $0x30] sm:$0xff]
        %v224 = vld [vmem:[%s214 + $0x38] sm:$0xff]
        %v225 = vld [vmem:[%s214 + $0x40] sm:$0xf]
        %v226 = vld [vmem:[%s214 + $0x48] sm:$0xff]
        %v227 = vld [vmem:[%s214 + $0x50] sm:$0xff]
        %v228 = vld [vmem:[%s214 + $0x58] sm:$0xf]
        %229 = vst [vmem:[#allocation2] sm:$0xff] %v217
        %230 = vst [vmem:[#allocation2 + $0x8] sm:$0xff] %v218
        %231 = vst [vmem:[#allocation2 + $0x10] sm:$0xf] %v219
        %232 = vst [vmem:[#allocation2 + $0x18] sm:$0xff] %v220
        %233 = vst [vmem:[#allocation2 + $0x20] sm:$0xff] %v221
        %234 = vst [vmem:[#allocation2 + $0x28] sm:$0xf] %v222
        %235 = vst [vmem:[#allocation2 + $0x30] sm:$0xff] %v223
        %236 = vst [vmem:[#allocation2 + $0x38] sm:$0xff] %v224
        %237 = vst [vmem:[#allocation2 + $0x40] sm:$0xf] %v225
        %238 = vst [vmem:[#allocation2 + $0x48] sm:$0xff] %v226
        %239 = vst [vmem:[#allocation2 + $0x50] sm:$0xff] %v227
        %240 = vst [vmem:[#allocation2 + $0x58] sm:$0xf] %v228
        %v241 = vld [vmem:[%s2] sm:$0xf]
        %v242 = vld [vmem:[#allocation2 + $0x3] sm:$0xff]
        %v243 = vld [vmem:[#allocation2 + $0xb] sm:$0xff]
        %v244 = vld [vmem:[#allocation2 + $0x1b] sm:$0xff]
        %v245 = vld [vmem:[#allocation2 + $0x23] sm:$0xff]
        %v246 = vld [vmem:[#allocation2 + $0x33] sm:$0xff]
        %v247 = vld [vmem:[#allocation2 + $0x3b] sm:$0xff]
        %v248 = vld [vmem:[#allocation2 + $0x4b] sm:$0xff]
        %v249 = vld [vmem:[#allocation2 + $0x53] sm:$0xff]
        %v250 = vld [vmem:[#allocation3] sm:$0xff]
        %v251 = vld [vmem:[#allocation3 + $0x8] sm:$0xff]
        %v252 = vld [vmem:[#allocation3 + $0x10] sm:$0xff]
        %v253 = vld [vmem:[#allocation3 + $0x18] sm:$0xff]
        %v254 = vld [vmem:[#allocation3 + $0x20] sm:$0xff]
        %v255 = vld [vmem:[#allocation3 + $0x28] sm:$0xff]
        %v256 = vld [vmem:[#allocation3 + $0x30] sm:$0xff]
        %v257 = vld [vmem:[#allocation3 + $0x38] sm:$0xff]
        %v258 = vld [vmem:[#allocation3 + $0x40] sm:$0xff]
        %v259 = vld [vmem:[#allocation3 + $0x48] sm:$0xff]
        %v260 = vld [vmem:[#allocation3 + $0x50] sm:$0xff]
        %v261 = vld [vmem:[#allocation3 + $0x58] sm:$0xff]
        %v262 = vld [vmem:[#allocation3 + $0x60] sm:$0xff]
        %v263 = vld [vmem:[#allocation3 + $0x68] sm:$0xff]
        %v264 = vld [vmem:[#allocation3 + $0x70] sm:$0xff]
        %v265 = vld [vmem:[#allocation3 + $0x78] sm:$0xff]
        %v266 = vld [vmem:[#allocation2 + $0x4] sm:$0xff]
        %v267 = vld [vmem:[#allocation2 + $0xc] sm:$0xff]
        %v268 = vld [vmem:[#allocation2 + $0x1c] sm:$0xff]
        %v269 = vld [vmem:[#allocation2 + $0x24] sm:$0xff]
        %v270 = vld [vmem:[#allocation2 + $0x34] sm:$0xff]
        %v271 = vld [vmem:[#allocation2 + $0x3c] sm:$0xff]
        %v272 = vld [vmem:[#allocation2 + $0x4c] sm:$0xff]
        %v273 = vld [vmem:[#allocation2 + $0x54] sm:$0xff]
        %s274 = scalar_lea.vmem [#allocation3], 128
        %v275 = vld [vmem:[%s274] sm:$0xff]
        %v276 = vld [vmem:[%s274 + $0x8] sm:$0xff]
        %v277 = vld [vmem:[%s274 + $0x10] sm:$0xff]
        %v278 = vld [vmem:[%s274 + $0x18] sm:$0xff]
        %v279 = vld [vmem:[%s274 + $0x20] sm:$0xff]
        %v280 = vld [vmem:[%s274 + $0x28] sm:$0xff]
        %v281 = vld [vmem:[%s274 + $0x30] sm:$0xff]
        %v282 = vld [vmem:[%s274 + $0x38] sm:$0xff]
        %v283 = vld [vmem:[%s274 + $0x40] sm:$0xff]
        %v284 = vld [vmem:[%s274 + $0x48] sm:$0xff]
        %v285 = vld [vmem:[%s274 + $0x50] sm:$0xff]
        %v286 = vld [vmem:[%s274 + $0x58] sm:$0xff]
        %v287 = vld [vmem:[%s274 + $0x60] sm:$0xff]
        %v288 = vld [vmem:[%s274 + $0x68] sm:$0xff]
        %v289 = vld [vmem:[%s274 + $0x70] sm:$0xff]
        %v290 = vld [vmem:[%s274 + $0x78] sm:$0xff]
        %291 = vmatprep.subr.mxu0 0.0
        %292 = vmatpush1.msra.mxu0 %v275
        %293 = vmatprep.subr.mxu0 0.0
        %294 = vmatpush1.msra.mxu0 %v276
        %295 = vmatprep.subr.mxu0 0.0
        %296 = vmatpush1.msra.mxu0 %v277
        %297 = vmatprep.subr.mxu0 0.0
        %298 = vmatpush1.msra.mxu0 %v278
        %299 = vmatprep.subr.mxu0 0.0
        %300 = vmatpush1.msra.mxu0 %v279
        %301 = vmatprep.subr.mxu0 0.0
        %302 = vmatpush1.msra.mxu0 %v280
        %303 = vmatprep.subr.mxu0 0.0
        %304 = vmatpush1.msra.mxu0 %v281
        %305 = vmatprep.subr.mxu0 0.0
        %306 = vmatpush1.msra.mxu0 %v282
        %307 = vmatprep.subr.mxu0 0.0
        %308 = vmatpush1.msra.mxu0 %v283
        %309 = vmatprep.subr.mxu0 0.0
        %310 = vmatpush1.msra.mxu0 %v284
        %311 = vmatprep.subr.mxu0 0.0
        %312 = vmatpush1.msra.mxu0 %v285
        %313 = vmatprep.subr.mxu0 0.0
        %314 = vmatpush1.msra.mxu0 %v286
        %315 = vmatprep.subr.mxu0 0.0
        %316 = vmatpush1.msra.mxu0 %v287
        %317 = vmatprep.subr.mxu0 0.0
        %318 = vmatpush1.msra.mxu0 %v288
        %319 = vmatprep.subr.mxu0 0.0
        %320 = vmatpush1.msra.mxu0 %v289
        %321 = vmatprep.subr.mxu0 0.0
        %322 = vmatpush1.msra.mxu0 %v290
        %323 = vmatprep.subr.mxu0 0.0
        %324 = vmatpush1.msra.mxu0 0.0
        %325 = vmatprep.subr.mxu0 0.0
        %326 = vmatpush1.msra.mxu0 0.0
        %327 = vmatprep.subr.mxu0 0.0
        %328 = vmatpush1.msra.mxu0 0.0
        %329 = vmatprep.subr.mxu0 0.0
        %330 = vmatpush1.msra.mxu0 0.0
        %331 = vmatprep.subr.mxu0 0.0
        %332 = vmatpush1.msra.mxu0 0.0
        %333 = vmatprep.subr.mxu0 0.0
        %334 = vmatpush1.msra.mxu0 0.0
        %335 = vmatprep.subr.mxu0 0.0
        %336 = vmatpush1.msra.mxu0 0.0
        %337 = vmatprep.subr.mxu0 0.0
        %338 = vmatpush1.msra.mxu0 0.0
        %339 = vmatprep.subr.mxu0 0.0
        %340 = vmatpush1.msra.mxu0 0.0
        %341 = vmatprep.subr.mxu0 0.0
        %342 = vmatpush1.msra.mxu0 0.0
        %343 = vmatprep.subr.mxu0 0.0
        %344 = vmatpush1.msra.mxu0 0.0
        %345 = vmatprep.subr.mxu0 0.0
        %346 = vmatpush1.msra.mxu0 0.0
        %347 = vmatprep.subr.mxu0 0.0
        %348 = vmatpush1.msra.mxu0 0.0
        %349 = vmatprep.subr.mxu0 0.0
        %350 = vmatpush1.msra.mxu0 0.0
        %351 = vmatprep.subr.mxu0 0.0
        %352 = vmatpush1.msra.mxu0 0.0
        %353 = vmatprep.subr.mxu0 0.0
        %354 = vmatpush1.msra.mxu0 0.0
        %355 = vmatprep.mubr.f32.mxu0 0.0
        %356 = vmatmul.mubr.f32.gmra.mrb[0].mxu0 %v266
        %v357 = vpop.f32.mrb[0].mxu0
        %v358 = vadd.f32 0.0, %v357
        %v359 = vpop.f32.mrb[0].mxu0
        %360 = vmatprep.mubr.f32.mxu0 0.0
        %361 = vmatmul.mubr.f32.gmra.mrb[0].mxu0 %v267
        %v362 = vpop.f32.mrb[0].mxu0
        %v363 = vadd.f32 0.0, %v362
        %v364 = vpop.f32.mrb[0].mxu0
        %365 = vmatprep.mubr.f32.mxu0 0.0
        %366 = vmatmul.mubr.f32.gmra.mrb[0].mxu0 %v268
        %v367 = vpop.f32.mrb[0].mxu0
        %v368 = vadd.f32 0.0, %v367
        %v369 = vpop.f32.mrb[0].mxu0
        %370 = vmatprep.mubr.f32.mxu0 0.0
        %371 = vmatmul.mubr.f32.gmra.mrb[0].mxu0 %v269
        %v372 = vpop.f32.mrb[0].mxu0
        %v373 = vadd.f32 0.0, %v372
        %v374 = vpop.f32.mrb[0].mxu0
        %375 = vmatprep.mubr.f32.mxu0 0.0
        %376 = vmatmul.mubr.f32.gmra.mrb[0].mxu0 %v270
        %v377 = vpop.f32.mrb[0].mxu0
        %v378 = vadd.f32 0.0, %v377
        %v379 = vpop.f32.mrb[0].mxu0
        %380 = vmatprep.mubr.f32.mxu0 0.0
        %381 = vmatmul.mubr.f32.gmra.mrb[0].mxu0 %v271
        %v382 = vpop.f32.mrb[0].mxu0
        %v383 = vadd.f32 0.0, %v382
        %v384 = vpop.f32.mrb[0].mxu0
        %385 = vmatprep.mubr.f32.mxu0 0.0
        %386 = vmatmul.mubr.f32.gmra.mrb[0].mxu0 %v272
        %v387 = vpop.f32.mrb[0].mxu0
        %v388 = vadd.f32 0.0, %v387
        %v389 = vpop.f32.mrb[0].mxu0
        %390 = vmatprep.mubr.f32.mxu0 0.0
        %391 = vmatmul.mubr.f32.gmra.mrb[0].mxu0 %v273
        %v392 = vpop.f32.mrb[0].mxu0
        %v393 = vadd.f32 0.0, %v392
        %v394 = vpop.f32.mrb[0].mxu0
        %395 = vdwg.mxu0
        %396 = vmatprep.subr.mxu0 0.0
        %397 = vmatpush1.msra.mxu0 %v250
        %398 = vmatprep.subr.mxu0 0.0
        %399 = vmatpush1.msra.mxu0 %v251
        %400 = vmatprep.subr.mxu0 0.0
        %401 = vmatpush1.msra.mxu0 %v252
        %402 = vmatprep.subr.mxu0 0.0
        %403 = vmatpush1.msra.mxu0 %v253
        %404 = vmatprep.subr.mxu0 0.0
        %405 = vmatpush1.msra.mxu0 %v254
        %406 = vmatprep.subr.mxu0 0.0
        %407 = vmatpush1.msra.mxu0 %v255
        %408 = vmatprep.subr.mxu0 0.0
        %409 = vmatpush1.msra.mxu0 %v256
        %410 = vmatprep.subr.mxu0 0.0
        %411 = vmatpush1.msra.mxu0 %v257
        %412 = vmatprep.subr.mxu0 0.0
        %413 = vmatpush1.msra.mxu0 %v258
        %414 = vmatprep.subr.mxu0 0.0
        %415 = vmatpush1.msra.mxu0 %v259
        %416 = vmatprep.subr.mxu0 0.0
        %417 = vmatpush1.msra.mxu0 %v260
        %418 = vmatprep.subr.mxu0 0.0
        %419 = vmatpush1.msra.mxu0 %v261
        %420 = vmatprep.subr.mxu0 0.0
        %421 = vmatpush1.msra.mxu0 %v262
        %422 = vmatprep.subr.mxu0 0.0
        %423 = vmatpush1.msra.mxu0 %v263
        %424 = vmatprep.subr.mxu0 0.0
        %425 = vmatpush1.msra.mxu0 %v264
        %426 = vmatprep.subr.mxu0 0.0
        %427 = vmatpush1.msra.mxu0 %v265
        %428 = vmatprep.subr.mxu0 0.0
        %429 = vmatpush1.msra.mxu0 0.0
        %430 = vmatprep.subr.mxu0 0.0
        %431 = vmatpush1.msra.mxu0 0.0
        %432 = vmatprep.subr.mxu0 0.0
        %433 = vmatpush1.msra.mxu0 0.0
        %434 = vmatprep.subr.mxu0 0.0
        %435 = vmatpush1.msra.mxu0 0.0
        %436 = vmatprep.subr.mxu0 0.0
        %437 = vmatpush1.msra.mxu0 0.0
        %438 = vmatprep.subr.mxu0 0.0
        %439 = vmatpush1.msra.mxu0 0.0
        %440 = vmatprep.subr.mxu0 0.0
        %441 = vmatpush1.msra.mxu0 0.0
        %442 = vmatprep.subr.mxu0 0.0
        %443 = vmatpush1.msra.mxu0 0.0
        %444 = vmatprep.subr.mxu0 0.0
        %445 = vmatpush1.msra.mxu0 0.0
        %446 = vmatprep.subr.mxu0 0.0
        %447 = vmatpush1.msra.mxu0 0.0
        %448 = vmatprep.subr.mxu0 0.0
        %449 = vmatpush1.msra.mxu0 0.0
        %450 = vmatprep.subr.mxu0 0.0
        %451 = vmatpush1.msra.mxu0 0.0
        %452 = vmatprep.subr.mxu0 0.0
        %453 = vmatpush1.msra.mxu0 0.0
        %454 = vmatprep.subr.mxu0 0.0
        %455 = vmatpush1.msra.mxu0 0.0
        %456 = vmatprep.subr.mxu0 0.0
        %457 = vmatpush1.msra.mxu0 0.0
        %458 = vmatprep.subr.mxu0 0.0
        %459 = vmatpush1.msra.mxu0 0.0
        %460 = vmatprep.mubr.f32.mxu0 0.0
        %461 = vmatmul.mubr.f32.gmra.mrb[0].mxu0 %v242
        %v462 = vpop.f32.mrb[0].mxu0
        %v463 = vadd.f32 %v358, %v462
        %v464 = vpop.f32.mrb[0].mxu0
        %465 = vmatprep.mubr.f32.mxu0 0.0
        %466 = vmatmul.mubr.f32.gmra.mrb[0].mxu0 %v243
        %v467 = vpop.f32.mrb[0].mxu0
        %v468 = vadd.f32 %v363, %v467
        %v469 = vpop.f32.mrb[0].mxu0
        %470 = vmatprep.mubr.f32.mxu0 0.0
        %471 = vmatmul.mubr.f32.gmra.mrb[0].mxu0 %v244
        %v472 = vpop.f32.mrb[0].mxu0
        %v473 = vadd.f32 %v368, %v472
        %v474 = vpop.f32.mrb[0].mxu0
        %475 = vmatprep.mubr.f32.mxu0 0.0
        %476 = vmatmul.mubr.f32.gmra.mrb[0].mxu0 %v245
        %v477 = vpop.f32.mrb[0].mxu0
        %v478 = vadd.f32 %v373, %v477
        %v479 = vpop.f32.mrb[0].mxu0
        %480 = vmatprep.mubr.f32.mxu0 0.0
        %481 = vmatmul.mubr.f32.gmra.mrb[0].mxu0 %v246
        %v482 = vpop.f32.mrb[0].mxu0
        %v483 = vadd.f32 %v378, %v482
        %v484 = vpop.f32.mrb[0].mxu0
        %485 = vmatprep.mubr.f32.mxu0 0.0
        %486 = vmatmul.mubr.f32.gmra.mrb[0].mxu0 %v247
        %v487 = vpop.f32.mrb[0].mxu0
        %v488 = vadd.f32 %v383, %v487
        %v489 = vpop.f32.mrb[0].mxu0
        %490 = vmatprep.mubr.f32.mxu0 0.0
        %491 = vmatmul.mubr.f32.gmra.mrb[0].mxu0 %v248
        %v492 = vpop.f32.mrb[0].mxu0
        %v493 = vadd.f32 %v388, %v492
        %v494 = vpop.f32.mrb[0].mxu0
        %495 = vmatprep.mubr.f32.mxu0 0.0
        %496 = vmatmul.mubr.f32.gmra.mrb[0].mxu0 %v249
        %v497 = vpop.f32.mrb[0].mxu0
        %v498 = vadd.f32 %v393, %v497
        %v499 = vpop.f32.mrb[0].mxu0
        %500 = vdwg.mxu0
        %v501 = vlaneseq
        %v502 = vshrl.u32 %v501, 7
        %v503 = vsub.s32 0, %v502
        %v504 = vrot.slane %v241, %v503
        %v505 = vadd.f32 %v463, %v504
        %v506 = vadd.f32 %v468, %v504
        %v507 = vadd.f32 %v473, %v504
        %v508 = vadd.f32 %v478, %v504
        %v509 = vadd.f32 %v483, %v504
        %v510 = vadd.f32 %v488, %v504
        %v511 = vadd.f32 %v493, %v504
        %v512 = vadd.f32 %v498, %v504
        %v513 = vmax.f32 %v505, 0.0
        %v514 = vmax.f32 %v506, 0.0
        %v515 = vmax.f32 %v507, 0.0
        %v516 = vmax.f32 %v508, 0.0
        %v517 = vmax.f32 %v509, 0.0
        %v518 = vmax.f32 %v510, 0.0
        %v519 = vmax.f32 %v511, 0.0
        %v520 = vmax.f32 %v512, 0.0
        %v521 = vlaneseq
        %v522 = vshrl.u32 %v521, 7
        %v523 = vsub.s32 1, %v522
        %v524 = vrot.slane %v241, %v523
        %v525 = vmul.f32 %v513, %v524
        %v526 = vmul.f32 %v514, %v524
        %v527 = vmul.f32 %v515, %v524
        %v528 = vmul.f32 %v516, %v524
        %v529 = vmul.f32 %v517, %v524
        %v530 = vmul.f32 %v518, %v524
        %v531 = vmul.f32 %v519, %v524
        %v532 = vmul.f32 %v520, %v524
        %v533 = vlaneseq
        %v534 = vshrl.u32 %v533, 7
        %v535 = vsub.s32 2, %v534
        %v536 = vrot.slane %v241, %v535
        %v537 = vadd.f32 %v525, %v536
        %v538 = vadd.f32 %v526, %v536
        %v539 = vadd.f32 %v527, %v536
        %v540 = vadd.f32 %v528, %v536
        %v541 = vadd.f32 %v529, %v536
        %v542 = vadd.f32 %v530, %v536
        %v543 = vadd.f32 %v531, %v536
        %v544 = vadd.f32 %v532, %v536
        %v545 = vld [vmem:[%s3] sm:$0xff]
        %v546 = vld [vmem:[%s3 + $0x8] sm:$0xff]
        %v547 = vld [vmem:[%s3 + $0x10] sm:$0xff]
        %v548 = vld [vmem:[%s3 + $0x18] sm:$0xff]
        %v549 = vld [vmem:[%s3 + $0x20] sm:$0xff]
        %v550 = vld [vmem:[%s3 + $0x28] sm:$0xff]
        %v551 = vld [vmem:[%s3 + $0x30] sm:$0xff]
        %v552 = vld [vmem:[%s3 + $0x38] sm:$0xff]
        %v553 = vld [vmem:[%s3 + $0x40] sm:$0xff]
        %v554 = vld [vmem:[%s3 + $0x48] sm:$0xff]
        %v555 = vld [vmem:[%s3 + $0x50] sm:$0xff]
        %v556 = vld [vmem:[%s3 + $0x58] sm:$0xff]
        %v557 = vld [vmem:[%s3 + $0x60] sm:$0xff]
        %v558 = vld [vmem:[%s3 + $0x68] sm:$0xff]
        %v559 = vld [vmem:[%s3 + $0x70] sm:$0xff]
        %v560 = vld [vmem:[%s3 + $0x78] sm:$0xff]
        %v561 = vlaneseq
        %v562 = vshrl.u32 %v561, 7
        %v563 = vsub.s32 3, %v562
        %v564 = vrot.slane %v241, %v563
        %565 = vmatprep.subr.mxu0 0.0
        %566 = vmatpush1.msra.mxu0 %v545
        %567 = vmatprep.subr.mxu0 0.0
        %568 = vmatpush1.msra.mxu0 %v546
        %569 = vmatprep.subr.mxu0 0.0
        %570 = vmatpush1.msra.mxu0 %v547
        %571 = vmatprep.subr.mxu0 0.0
        %572 = vmatpush1.msra.mxu0 %v548
        %573 = vmatprep.subr.mxu0 0.0
        %574 = vmatpush1.msra.mxu0 %v549
        %575 = vmatprep.subr.mxu0 0.0
        %576 = vmatpush1.msra.mxu0 %v550
        %577 = vmatprep.subr.mxu0 0.0
        %578 = vmatpush1.msra.mxu0 %v551
        %579 = vmatprep.subr.mxu0 0.0
        %580 = vmatpush1.msra.mxu0 %v552
        %581 = vmatprep.subr.mxu0 0.0
        %582 = vmatpush1.msra.mxu0 %v553
        %583 = vmatprep.subr.mxu0 0.0
        %584 = vmatpush1.msra.mxu0 %v554
        %585 = vmatprep.subr.mxu0 0.0
        %586 = vmatpush1.msra.mxu0 %v555
        %587 = vmatprep.subr.mxu0 0.0
        %588 = vmatpush1.msra.mxu0 %v556
        %589 = vmatprep.subr.mxu0 0.0
        %590 = vmatpush1.msra.mxu0 %v557
        %591 = vmatprep.subr.mxu0 0.0
        %592 = vmatpush1.msra.mxu0 %v558
        %593 = vmatprep.subr.mxu0 0.0
        %594 = vmatpush1.msra.mxu0 %v559
        %595 = vmatprep.subr.mxu0 0.0
        %596 = vmatpush1.msra.mxu0 %v560
        %597 = vmatprep.subr.mxu0 0.0
        %598 = vmatpush1.msra.mxu0 0.0
        %599 = vmatprep.subr.mxu0 0.0
        %600 = vmatpush1.msra.mxu0 0.0
        %601 = vmatprep.subr.mxu0 0.0
        %602 = vmatpush1.msra.mxu0 0.0
        %603 = vmatprep.subr.mxu0 0.0
        %604 = vmatpush1.msra.mxu0 0.0
        %605 = vmatprep.subr.mxu0 0.0
        %606 = vmatpush1.msra.mxu0 0.0
        %607 = vmatprep.subr.mxu0 0.0
        %608 = vmatpush1.msra.mxu0 0.0
        %609 = vmatprep.subr.mxu0 0.0
        %610 = vmatpush1.msra.mxu0 0.0
        %611 = vmatprep.subr.mxu0 0.0
        %612 = vmatpush1.msra.mxu0 0.0
        %613 = vmatprep.subr.mxu0 0.0
        %614 = vmatpush1.msra.mxu0 0.0
        %615 = vmatprep.subr.mxu0 0.0
        %616 = vmatpush1.msra.mxu0 0.0
        %617 = vmatprep.subr.mxu0 0.0
        %618 = vmatpush1.msra.mxu0 0.0
        %619 = vmatprep.subr.mxu0 0.0
        %620 = vmatpush1.msra.mxu0 0.0
        %621 = vmatprep.subr.mxu0 0.0
        %622 = vmatpush1.msra.mxu0 0.0
        %623 = vmatprep.subr.mxu0 0.0
        %624 = vmatpush1.msra.mxu0 0.0
        %625 = vmatprep.subr.mxu0 0.0
        %626 = vmatpush1.msra.mxu0 0.0
        %627 = vmatprep.subr.mxu0 0.0
        %628 = vmatpush1.msra.mxu0 0.0
        %629 = vmatprep.mubr.f32.mxu0 0.0
        %630 = vmatmul.mubr.f32.gmra.mrb[0].mxu0 %v266
        %v631 = vpop.f32.mrb[0].mxu0
        %v632 = vadd.f32 %v564, %v631
        %v633 = vpop.f32.mrb[0].mxu0
        %634 = vmatprep.mubr.f32.mxu0 0.0
        %635 = vmatmul.mubr.f32.gmra.mrb[0].mxu0 %v267
        %v636 = vpop.f32.mrb[0].mxu0
        %v637 = vadd.f32 %v564, %v636
        %v638 = vpop.f32.mrb[0].mxu0
        %639 = vmatprep.mubr.f32.mxu0 0.0
        %640 = vmatmul.mubr.f32.gmra.mrb[0].mxu0 %v268
        %v641 = vpop.f32.mrb[0].mxu0
        %v642 = vadd.f32 %v564, %v641
        %v643 = vpop.f32.mrb[0].mxu0
        %644 = vmatprep.mubr.f32.mxu0 0.0
        %645 = vmatmul.mubr.f32.gmra.mrb[0].mxu0 %v269
        %v646 = vpop.f32.mrb[0].mxu0
        %v647 = vadd.f32 %v564, %v646
        %v648 = vpop.f32.mrb[0].mxu0
        %649 = vmatprep.mubr.f32.mxu0 0.0
        %650 = vmatmul.mubr.f32.gmra.mrb[0].mxu0 %v270
        %v651 = vpop.f32.mrb[0].mxu0
        %v652 = vadd.f32 %v564, %v651
        %v653 = vpop.f32.mrb[0].mxu0
        %654 = vmatprep.mubr.f32.mxu0 0.0
        %655 = vmatmul.mubr.f32.gmra.mrb[0].mxu0 %v271
        %v656 = vpop.f32.mrb[0].mxu0
        %v657 = vadd.f32 %v564, %v656
        %v658 = vpop.f32.mrb[0].mxu0
        %659 = vmatprep.mubr.f32.mxu0 0.0
        %660 = vmatmul.mubr.f32.gmra.mrb[0].mxu0 %v272
        %v661 = vpop.f32.mrb[0].mxu0
        %v662 = vadd.f32 %v564, %v661
        %v663 = vpop.f32.mrb[0].mxu0
        %664 = vmatprep.mubr.f32.mxu0 0.0
        %665 = vmatmul.mubr.f32.gmra.mrb[0].mxu0 %v273
        %v666 = vpop.f32.mrb[0].mxu0
        %v667 = vadd.f32 %v564, %v666
        %v668 = vpop.f32.mrb[0].mxu0
        %669 = vdwg.mxu0
        %v670 = vadd.f32 %v537, %v632
        %v671 = vadd.f32 %v538, %v637
        %v672 = vadd.f32 %v539, %v642
        %v673 = vadd.f32 %v540, %v647
        %v674 = vadd.f32 %v541, %v652
        %v675 = vadd.f32 %v542, %v657
        %v676 = vadd.f32 %v543, %v662
        %v677 = vadd.f32 %v544, %v667
        %v678 = vmax.f32 %v670, 0.0
        %v679 = vmax.f32 %v671, 0.0
        %v680 = vmax.f32 %v672, 0.0
        %v681 = vmax.f32 %v673, 0.0
        %v682 = vmax.f32 %v674, 0.0
        %v683 = vmax.f32 %v675, 0.0
        %v684 = vmax.f32 %v676, 0.0
        %v685 = vmax.f32 %v677, 0.0
        %686 = vst [vmem:[#allocation2 + $0x4] sm:$0xff] %v678
        %687 = vst [vmem:[#allocation2 + $0xc] sm:$0xff] %v679
        %688 = vst [vmem:[#allocation2 + $0x1c] sm:$0xff] %v680
        %689 = vst [vmem:[#allocation2 + $0x24] sm:$0xff] %v681
        %690 = vst [vmem:[#allocation2 + $0x34] sm:$0xff] %v682
        %691 = vst [vmem:[#allocation2 + $0x3c] sm:$0xff] %v683
        %692 = vst [vmem:[#allocation2 + $0x4c] sm:$0xff] %v684
        %693 = vst [vmem:[#allocation2 + $0x54] sm:$0xff] %v685
        %s694 = scalar_lea.vmem %s2, 4
        %v695 = vld [vmem:[%s694] sm:$0xf]
        %v696 = vld [vmem:[#allocation2 + $0x2] sm:$0xff]
        %v697 = vld [vmem:[#allocation2 + $0xa] sm:$0xff]
        %v698 = vld [vmem:[#allocation2 + $0x1a] sm:$0xff]
        %v699 = vld [vmem:[#allocation2 + $0x22] sm:$0xff]
        %v700 = vld [vmem:[#allocation2 + $0x32] sm:$0xff]
        %v701 = vld [vmem:[#allocation2 + $0x3a] sm:$0xff]
        %v702 = vld [vmem:[#allocation2 + $0x4a] sm:$0xff]
        %v703 = vld [vmem:[#allocation2 + $0x52] sm:$0xff]
        %s704 = scalar_lea.vmem [#allocation3], 256
        %v705 = vld [vmem:[%s704] sm:$0xff]
        %v706 = vld [vmem:[%s704 + $0x8] sm:$0xff]
        %v707 = vld [vmem:[%s704 + $0x10] sm:$0xff]
        %v708 = vld [vmem:[%s704 + $0x18] sm:$0xff]
        %v709 = vld [vmem:[%s704 + $0x20] sm:$0xff]
        %v710 = vld [vmem:[%s704 + $0x28] sm:$0xff]
        %v711 = vld [vmem:[%s704 + $0x30] sm:$0xff]
        %v712 = vld [vmem:[%s704 + $0x38] sm:$0xff]
        %v713 = vld [vmem:[%s704 + $0x40] sm:$0xff]
        %v714 = vld [vmem:[%s704 + $0x48] sm:$0xff]
        %v715 = vld [vmem:[%s704 + $0x50] sm:$0xff]
        %v716 = vld [vmem:[%s704 + $0x58] sm:$0xff]
        %v717 = vld [vmem:[%s704 + $0x60] sm:$0xff]
        %v718 = vld [vmem:[%s704 + $0x68] sm:$0xff]
        %v719 = vld [vmem:[%s704 + $0x70] sm:$0xff]
        %v720 = vld [vmem:[%s704 + $0x78] sm:$0xff]
        %v721 = vld [vmem:[#allocation2 + $0x4] sm:$0xff]
        %v722 = vld [vmem:[#allocation2 + $0xc] sm:$0xff]
        %v723 = vld [vmem:[#allocation2 + $0x1c] sm:$0xff]
        %v724 = vld [vmem:[#allocation2 + $0x24] sm:$0xff]
        %v725 = vld [vmem:[#allocation2 + $0x34] sm:$0xff]
        %v726 = vld [vmem:[#allocation2 + $0x3c] sm:$0xff]
        %v727 = vld [vmem:[#allocation2 + $0x4c] sm:$0xff]
        %v728 = vld [vmem:[#allocation2 + $0x54] sm:$0xff]
        %s729 = scalar_lea.vmem [#allocation3], 384
        %v730 = vld [vmem:[%s729] sm:$0xff]
        %v731 = vld [vmem:[%s729 + $0x8] sm:$0xff]
        %v732 = vld [vmem:[%s729 + $0x10] sm:$0xff]
        %v733 = vld [vmem:[%s729 + $0x18] sm:$0xff]
        %v734 = vld [vmem:[%s729 + $0x20] sm:$0xff]
        %v735 = vld [vmem:[%s729 + $0x28] sm:$0xff]
        %v736 = vld [vmem:[%s729 + $0x30] sm:$0xff]
        %v737 = vld [vmem:[%s729 + $0x38] sm:$0xff]
        %v738 = vld [vmem:[%s729 + $0x40] sm:$0xff]
        %v739 = vld [vmem:[%s729 + $0x48] sm:$0xff]
        %v740 = vld [vmem:[%s729 + $0x50] sm:$0xff]
        %v741 = vld [vmem:[%s729 + $0x58] sm:$0xff]
        %v742 = vld [vmem:[%s729 + $0x60] sm:$0xff]
        %v743 = vld [vmem:[%s729 + $0x68] sm:$0xff]
        %v744 = vld [vmem:[%s729 + $0x70] sm:$0xff]
        %v745 = vld [vmem:[%s729 + $0x78] sm:$0xff]
        %746 = vmatprep.subr.mxu0 0.0
        %747 = vmatpush1.msra.mxu0 %v730
        %748 = vmatprep.subr.mxu0 0.0
        %749 = vmatpush1.msra.mxu0 %v731
        %750 = vmatprep.subr.mxu0 0.0
        %751 = vmatpush1.msra.mxu0 %v732
        %752 = vmatprep.subr.mxu0 0.0
        %753 = vmatpush1.msra.mxu0 %v733
        %754 = vmatprep.subr.mxu0 0.0
        %755 = vmatpush1.msra.mxu0 %v734
        %756 = vmatprep.subr.mxu0 0.0
        %757 = vmatpush1.msra.mxu0 %v735
        %758 = vmatprep.subr.mxu0 0.0
        %759 = vmatpush1.msra.mxu0 %v736
        %760 = vmatprep.subr.mxu0 0.0
        %761 = vmatpush1.msra.mxu0 %v737
        %762 = vmatprep.subr.mxu0 0.0
        %763 = vmatpush1.msra.mxu0 %v738
        %764 = vmatprep.subr.mxu0 0.0
        %765 = vmatpush1.msra.mxu0 %v739
        %766 = vmatprep.subr.mxu0 0.0
        %767 = vmatpush1.msra.mxu0 %v740
        %768 = vmatprep.subr.mxu0 0.0
        %769 = vmatpush1.msra.mxu0 %v741
        %770 = vmatprep.subr.mxu0 0.0
        %771 = vmatpush1.msra.mxu0 %v742
        %772 = vmatprep.subr.mxu0 0.0
        %773 = vmatpush1.msra.mxu0 %v743
        %774 = vmatprep.subr.mxu0 0.0
        %775 = vmatpush1.msra.mxu0 %v744
        %776 = vmatprep.subr.mxu0 0.0
        %777 = vmatpush1.msra.mxu0 %v745
        %778 = vmatprep.subr.mxu0 0.0
        %779 = vmatpush1.msra.mxu0 0.0
        %780 = vmatprep.subr.mxu0 0.0
        %781 = vmatpush1.msra.mxu0 0.0
        %782 = vmatprep.subr.mxu0 0.0
        %783 = vmatpush1.msra.mxu0 0.0
        %784 = vmatprep.subr.mxu0 0.0
        %785 = vmatpush1.msra.mxu0 0.0
        %786 = vmatprep.subr.mxu0 0.0
        %787 = vmatpush1.msra.mxu0 0.0
        %788 = vmatprep.subr.mxu0 0.0
        %789 = vmatpush1.msra.mxu0 0.0
        %790 = vmatprep.subr.mxu0 0.0
        %791 = vmatpush1.msra.mxu0 0.0
        %792 = vmatprep.subr.mxu0 0.0
        %793 = vmatpush1.msra.mxu0 0.0
        %794 = vmatprep.subr.mxu0 0.0
        %795 = vmatpush1.msra.mxu0 0.0
        %796 = vmatprep.subr.mxu0 0.0
        %797 = vmatpush1.msra.mxu0 0.0
        %798 = vmatprep.subr.mxu0 0.0
        %799 = vmatpush1.msra.mxu0 0.0
        %800 = vmatprep.subr.mxu0 0.0
        %801 = vmatpush1.msra.mxu0 0.0
        %802 = vmatprep.subr.mxu0 0.0
        %803 = vmatpush1.msra.mxu0 0.0
        %804 = vmatprep.subr.mxu0 0.0
        %805 = vmatpush1.msra.mxu0 0.0
        %806 = vmatprep.subr.mxu0 0.0
        %807 = vmatpush1.msra.mxu0 0.0
        %808 = vmatprep.subr.mxu0 0.0
        %809 = vmatpush1.msra.mxu0 0.0
        %810 = vmatprep.mubr.f32.mxu0 0.0
        %811 = vmatmul.mubr.f32.gmra.mrb[0].mxu0 %v721
        %v812 = vpop.f32.mrb[0].mxu0
        %v813 = vadd.f32 0.0, %v812
        %v814 = vpop.f32.mrb[0].mxu0
        %815 = vmatprep.mubr.f32.mxu0 0.0
        %816 = vmatmul.mubr.f32.gmra.mrb[0].mxu0 %v722
        %v817 = vpop.f32.mrb[0].mxu0
        %v818 = vadd.f32 0.0, %v817
        %v819 = vpop.f32.mrb[0].mxu0
        %820 = vmatprep.mubr.f32.mxu0 0.0
        %821 = vmatmul.mubr.f32.gmra.mrb[0].mxu0 %v723
        %v822 = vpop.f32.mrb[0].mxu0
        %v823 = vadd.f32 0.0, %v822
        %v824 = vpop.f32.mrb[0].mxu0
        %825 = vmatprep.mubr.f32.mxu0 0.0
        %826 = vmatmul.mubr.f32.gmra.mrb[0].mxu0 %v724
        %v827 = vpop.f32.mrb[0].mxu0
        %v828 = vadd.f32 0.0, %v827
        %v829 = vpop.f32.mrb[0].mxu0
        %830 = vmatprep.mubr.f32.mxu0 0.0
        %831 = vmatmul.mubr.f32.gmra.mrb[0].mxu0 %v725
        %v832 = vpop.f32.mrb[0].mxu0
        %v833 = vadd.f32 0.0, %v832
        %v834 = vpop.f32.mrb[0].mxu0
        %835 = vmatprep.mubr.f32.mxu0 0.0
        %836 = vmatmul.mubr.f32.gmra.mrb[0].mxu0 %v726
        %v837 = vpop.f32.mrb[0].mxu0
        %v838 = vadd.f32 0.0, %v837
        %v839 = vpop.f32.mrb[0].mxu0
        %840 = vmatprep.mubr.f32.mxu0 0.0
        %841 = vmatmul.mubr.f32.gmra.mrb[0].mxu0 %v727
        %v842 = vpop.f32.mrb[0].mxu0
        %v843 = vadd.f32 0.0, %v842
        %v844 = vpop.f32.mrb[0].mxu0
        %845 = vmatprep.mubr.f32.mxu0 0.0
        %846 = vmatmul.mubr.f32.gmra.mrb[0].mxu0 %v728
        %v847 = vpop.f32.mrb[0].mxu0
        %v848 = vadd.f32 0.0, %v847
        %v849 = vpop.f32.mrb[0].mxu0
        %850 = vdwg.mxu0
        %851 = vmatprep.subr.mxu0 0.0
        %852 = vmatpush1.msra.mxu0 %v705
        %853 = vmatprep.subr.mxu0 0.0
        %854 = vmatpush1.msra.mxu0 %v706
        %855 = vmatprep.subr.mxu0 0.0
        %856 = vmatpush1.msra.mxu0 %v707
        %857 = vmatprep.subr.mxu0 0.0
        %858 = vmatpush1.msra.mxu0 %v708
        %859 = vmatprep.subr.mxu0 0.0
        %860 = vmatpush1.msra.mxu0 %v709
        %861 = vmatprep.subr.mxu0 0.0
        %862 = vmatpush1.msra.mxu0 %v710
        %863 = vmatprep.subr.mxu0 0.0
        %864 = vmatpush1.msra.mxu0 %v711
        %865 = vmatprep.subr.mxu0 0.0
        %866 = vmatpush1.msra.mxu0 %v712
        %867 = vmatprep.subr.mxu0 0.0
        %868 = vmatpush1.msra.mxu0 %v713
        %869 = vmatprep.subr.mxu0 0.0
        %870 = vmatpush1.msra.mxu0 %v714
        %871 = vmatprep.subr.mxu0 0.0
        %872 = vmatpush1.msra.mxu0 %v715
        %873 = vmatprep.subr.mxu0 0.0
        %874 = vmatpush1.msra.mxu0 %v716
        %875 = vmatprep.subr.mxu0 0.0
        %876 = vmatpush1.msra.mxu0 %v717
        %877 = vmatprep.subr.mxu0 0.0
        %878 = vmatpush1.msra.mxu0 %v718
        %879 = vmatprep.subr.mxu0 0.0
        %880 = vmatpush1.msra.mxu0 %v719
        %881 = vmatprep.subr.mxu0 0.0
        %882 = vmatpush1.msra.mxu0 %v720
        %883 = vmatprep.subr.mxu0 0.0
        %884 = vmatpush1.msra.mxu0 0.0
        %885 = vmatprep.subr.mxu0 0.0
        %886 = vmatpush1.msra.mxu0 0.0
        %887 = vmatprep.subr.mxu0 0.0
        %888 = vmatpush1.msra.mxu0 0.0
        %889 = vmatprep.subr.mxu0 0.0
        %890 = vmatpush1.msra.mxu0 0.0
        %891 = vmatprep.subr.mxu0 0.0
        %892 = vmatpush1.msra.mxu0 0.0
        %893 = vmatprep.subr.mxu0 0.0
        %894 = vmatpush1.msra.mxu0 0.0
        %895 = vmatprep.subr.mxu0 0.0
        %896 = vmatpush1.msra.mxu0 0.0
        %897 = vmatprep.subr.mxu0 0.0
        %898 = vmatpush1.msra.mxu0 0.0
        %899 = vmatprep.subr.mxu0 0.0
        %900 = vmatpush1.msra.mxu0 0.0
        %901 = vmatprep.subr.mxu0 0.0
        %902 = vmatpush1.msra.mxu0 0.0
        %903 = vmatprep.subr.mxu0 0.0
        %904 = vmatpush1.msra.mxu0 0.0
        %905 = vmatprep.subr.mxu0 0.0
        %906 = vmatpush1.msra.mxu0 0.0
        %907 = vmatprep.subr.mxu0 0.0
        %908 = vmatpush1.msra.mxu0 0.0
        %909 = vmatprep.subr.mxu0 0.0
        %910 = vmatpush1.msra.mxu0 0.0
        %911 = vmatprep.subr.mxu0 0.0
        %912 = vmatpush1.msra.mxu0 0.0
        %913 = vmatprep.subr.mxu0 0.0
        %914 = vmatpush1.msra.mxu0 0.0
        %915 = vmatprep.mubr.f32.mxu0 0.0
        %916 = vmatmul.mubr.f32.gmra.mrb[0].mxu0 %v696
        %v917 = vpop.f32.mrb[0].mxu0
        %v918 = vadd.f32 %v813, %v917
        %v919 = vpop.f32.mrb[0].mxu0
        %920 = vmatprep.mubr.f32.mxu0 0.0
        %921 = vmatmul.mubr.f32.gmra.mrb[0].mxu0 %v697
        %v922 = vpop.f32.mrb[0].mxu0
        %v923 = vadd.f32 %v818, %v922
        %v924 = vpop.f32.mrb[0].mxu0
        %925 = vmatprep.mubr.f32.mxu0 0.0
        %926 = vmatmul.mubr.f32.gmra.mrb[0].mxu0 %v698
        %v927 = vpop.f32.mrb[0].mxu0
        %v928 = vadd.f32 %v823, %v927
        %v929 = vpop.f32.mrb[0].mxu0
        %930 = vmatprep.mubr.f32.mxu0 0.0
        %931 = vmatmul.mubr.f32.gmra.mrb[0].mxu0 %v699
        %v932 = vpop.f32.mrb[0].mxu0
        %v933 = vadd.f32 %v828, %v932
        %v934 = vpop.f32.mrb[0].mxu0
        %935 = vmatprep.mubr.f32.mxu0 0.0
        %936 = vmatmul.mubr.f32.gmra.mrb[0].mxu0 %v700
        %v937 = vpop.f32.mrb[0].mxu0
        %v938 = vadd.f32 %v833, %v937
        %v939 = vpop.f32.mrb[0].mxu0
        %940 = vmatprep.mubr.f32.mxu0 0.0
        %941 = vmatmul.mubr.f32.gmra.mrb[0].mxu0 %v701
        %v942 = vpop.f32.mrb[0].mxu0
        %v943 = vadd.f32 %v838, %v942
        %v944 = vpop.f32.mrb[0].mxu0
        %945 = vmatprep.mubr.f32.mxu0 0.0
        %946 = vmatmul.mubr.f32.gmra.mrb[0].mxu0 %v702
        %v947 = vpop.f32.mrb[0].mxu0
        %v948 = vadd.f32 %v843, %v947
        %v949 = vpop.f32.mrb[0].mxu0
        %950 = vmatprep.mubr.f32.mxu0 0.0
        %951 = vmatmul.mubr.f32.gmra.mrb[0].mxu0 %v703
        %v952 = vpop.f32.mrb[0].mxu0
        %v953 = vadd.f32 %v848, %v952
        %v954 = vpop.f32.mrb[0].mxu0
        %955 = vdwg.mxu0
        %v956 = vlaneseq
        %v957 = vshrl.u32 %v956, 7
        %v958 = vsub.s32 0, %v957
        %v959 = vrot.slane %v695, %v958
        %v960 = vadd.f32 %v918, %v959
        %v961 = vadd.f32 %v923, %v959
        %v962 = vadd.f32 %v928, %v959
        %v963 = vadd.f32 %v933, %v959
        %v964 = vadd.f32 %v938, %v959
        %v965 = vadd.f32 %v943, %v959
        %v966 = vadd.f32 %v948, %v959
        %v967 = vadd.f32 %v953, %v959
        %v968 = vmax.f32 %v960, 0.0
        %v969 = vmax.f32 %v961, 0.0
        %v970 = vmax.f32 %v962, 0.0
        %v971 = vmax.f32 %v963, 0.0
        %v972 = vmax.f32 %v964, 0.0
        %v973 = vmax.f32 %v965, 0.0
        %v974 = vmax.f32 %v966, 0.0
        %v975 = vmax.f32 %v967, 0.0
        %v976 = vlaneseq
        %v977 = vshrl.u32 %v976, 7
        %v978 = vsub.s32 1, %v977
        %v979 = vrot.slane %v695, %v978
        %v980 = vmul.f32 %v968, %v979
        %v981 = vmul.f32 %v969, %v979
        %v982 = vmul.f32 %v970, %v979
        %v983 = vmul.f32 %v971, %v979
        %v984 = vmul.f32 %v972, %v979
        %v985 = vmul.f32 %v973, %v979
        %v986 = vmul.f32 %v974, %v979
        %v987 = vmul.f32 %v975, %v979
        %v988 = vlaneseq
        %v989 = vshrl.u32 %v988, 7
        %v990 = vsub.s32 2, %v989
        %v991 = vrot.slane %v695, %v990
        %v992 = vadd.f32 %v980, %v991
        %v993 = vadd.f32 %v981, %v991
        %v994 = vadd.f32 %v982, %v991
        %v995 = vadd.f32 %v983, %v991
        %v996 = vadd.f32 %v984, %v991
        %v997 = vadd.f32 %v985, %v991
        %v998 = vadd.f32 %v986, %v991
        %v999 = vadd.f32 %v987, %v991
        %v1000 = vadd.f32 %v992, %v721
        %v1001 = vadd.f32 %v993, %v722
        %v1002 = vadd.f32 %v994, %v723
        %v1003 = vadd.f32 %v995, %v724
        %v1004 = vadd.f32 %v996, %v725
        %v1005 = vadd.f32 %v997, %v726
        %v1006 = vadd.f32 %v998, %v727
        %v1007 = vadd.f32 %v999, %v728
        %v1008 = vmax.f32 %v1000, 0.0
        %v1009 = vmax.f32 %v1001, 0.0
        %v1010 = vmax.f32 %v1002, 0.0
        %v1011 = vmax.f32 %v1003, 0.0
        %v1012 = vmax.f32 %v1004, 0.0
        %v1013 = vmax.f32 %v1005, 0.0
        %v1014 = vmax.f32 %v1006, 0.0
        %v1015 = vmax.f32 %v1007, 0.0
        %1016 = vst [vmem:[#allocation2 + $0x4] sm:$0xff] %v1008
        %1017 = vst [vmem:[#allocation2 + $0xc] sm:$0xff] %v1009
        %1018 = vst [vmem:[#allocation2 + $0x1c] sm:$0xff] %v1010
        %1019 = vst [vmem:[#allocation2 + $0x24] sm:$0xff] %v1011
        %1020 = vst [vmem:[#allocation2 + $0x34] sm:$0xff] %v1012
        %1021 = vst [vmem:[#allocation2 + $0x3c] sm:$0xff] %v1013
        %1022 = vst [vmem:[#allocation2 + $0x4c] sm:$0xff] %v1014
        %1023 = vst [vmem:[#allocation2 + $0x54] sm:$0xff] %v1015
        %s1024 = scalar_lea.vmem %s2, 8
        %v1025 = vld [vmem:[%s1024] sm:$0xf]
        %v1026 = vld [vmem:[#allocation2] sm:$0xff]
        %v1027 = vld [vmem:[#allocation2 + $0x8] sm:$0xff]
        %v1028 = vld [vmem:[#allocation2 + $0x18] sm:$0xff]
        %v1029 = vld [vmem:[#allocation2 + $0x20] sm:$0xff]
        %v1030 = vld [vmem:[#allocation2 + $0x30] sm:$0xff]
        %v1031 = vld [vmem:[#allocation2 + $0x38] sm:$0xff]
        %v1032 = vld [vmem:[#allocation2 + $0x48] sm:$0xff]
        %v1033 = vld [vmem:[#allocation2 + $0x50] sm:$0xff]
        %s1034 = scalar_lea.vmem [#allocation3], 512
        %v1035 = vld [vmem:[%s1034] sm:$0xff]
        %v1036 = vld [vmem:[%s1034 + $0x8] sm:$0xff]
        %v1037 = vld [vmem:[%s1034 + $0x10] sm:$0xff]
        %v1038 = vld [vmem:[%s1034 + $0x18] sm:$0xff]
        %v1039 = vld [vmem:[%s1034 + $0x20] sm:$0xff]
        %v1040 = vld [vmem:[%s1034 + $0x28] sm:$0xff]
        %v1041 = vld [vmem:[%s1034 + $0x30] sm:$0xff]
        %v1042 = vld [vmem:[%s1034 + $0x38] sm:$0xff]
        %v1043 = vld [vmem:[%s1034 + $0x40] sm:$0xff]
        %v1044 = vld [vmem:[%s1034 + $0x48] sm:$0xff]
        %v1045 = vld [vmem:[%s1034 + $0x50] sm:$0xff]
        %v1046 = vld [vmem:[%s1034 + $0x58] sm:$0xff]
        %v1047 = vld [vmem:[%s1034 + $0x60] sm:$0xff]
        %v1048 = vld [vmem:[%s1034 + $0x68] sm:$0xff]
        %v1049 = vld [vmem:[%s1034 + $0x70] sm:$0xff]
        %v1050 = vld [vmem:[%s1034 + $0x78] sm:$0xff]
        %v1051 = vld [vmem:[#allocation2 + $0x4] sm:$0xff]
        %v1052 = vld [vmem:[#allocation2 + $0xc] sm:$0xff]
        %v1053 = vld [vmem:[#allocation2 + $0x1c] sm:$0xff]
        %v1054 = vld [vmem:[#allocation2 + $0x24] sm:$0xff]
        %v1055 = vld [vmem:[#allocation2 + $0x34] sm:$0xff]
        %v1056 = vld [vmem:[#allocation2 + $0x3c] sm:$0xff]
        %v1057 = vld [vmem:[#allocation2 + $0x4c] sm:$0xff]
        %v1058 = vld [vmem:[#allocation2 + $0x54] sm:$0xff]
        %s1059 = scalar_lea.vmem [#allocation3], 640
        %v1060 = vld [vmem:[%s1059] sm:$0xff]
        %v1061 = vld [vmem:[%s1059 + $0x8] sm:$0xff]
        %v1062 = vld [vmem:[%s1059 + $0x10] sm:$0xff]
        %v1063 = vld [vmem:[%s1059 + $0x18] sm:$0xff]
        %v1064 = vld [vmem:[%s1059 + $0x20] sm:$0xff]
        %v1065 = vld [vmem:[%s1059 + $0x28] sm:$0xff]
        %v1066 = vld [vmem:[%s1059 + $0x30] sm:$0xff]
        %v1067 = vld [vmem:[%s1059 + $0x38] sm:$0xff]
        %v1068 = vld [vmem:[%s1059 + $0x40] sm:$0xff]
        %v1069 = vld [vmem:[%s1059 + $0x48] sm:$0xff]
        %v1070 = vld [vmem:[%s1059 + $0x50] sm:$0xff]
        %v1071 = vld [vmem:[%s1059 + $0x58] sm:$0xff]
        %v1072 = vld [vmem:[%s1059 + $0x60] sm:$0xff]
        %v1073 = vld [vmem:[%s1059 + $0x68] sm:$0xff]
        %v1074 = vld [vmem:[%s1059 + $0x70] sm:$0xff]
        %v1075 = vld [vmem:[%s1059 + $0x78] sm:$0xff]
        %1076 = vmatprep.subr.mxu0 0.0
        %1077 = vmatpush1.msra.mxu0 %v1060
        %1078 = vmatprep.subr.mxu0 0.0
        %1079 = vmatpush1.msra.mxu0 %v1061
        %1080 = vmatprep.subr.mxu0 0.0
        %1081 = vmatpush1.msra.mxu0 %v1062
        %1082 = vmatprep.subr.mxu0 0.0
        %1083 = vmatpush1.msra.mxu0 %v1063
        %1084 = vmatprep.subr.mxu0 0.0
        %1085 = vmatpush1.msra.mxu0 %v1064
        %1086 = vmatprep.subr.mxu0 0.0
        %1087 = vmatpush1.msra.mxu0 %v1065
        %1088 = vmatprep.subr.mxu0 0.0
        %1089 = vmatpush1.msra.mxu0 %v1066
        %1090 = vmatprep.subr.mxu0 0.0
        %1091 = vmatpush1.msra.mxu0 %v1067
        %1092 = vmatprep.subr.mxu0 0.0
        %1093 = vmatpush1.msra.mxu0 %v1068
        %1094 = vmatprep.subr.mxu0 0.0
        %1095 = vmatpush1.msra.mxu0 %v1069
        %1096 = vmatprep.subr.mxu0 0.0
        %1097 = vmatpush1.msra.mxu0 %v1070
        %1098 = vmatprep.subr.mxu0 0.0
        %1099 = vmatpush1.msra.mxu0 %v1071
        %1100 = vmatprep.subr.mxu0 0.0
        %1101 = vmatpush1.msra.mxu0 %v1072
        %1102 = vmatprep.subr.mxu0 0.0
        %1103 = vmatpush1.msra.mxu0 %v1073
        %1104 = vmatprep.subr.mxu0 0.0
        %1105 = vmatpush1.msra.mxu0 %v1074
        %1106 = vmatprep.subr.mxu0 0.0
        %1107 = vmatpush1.msra.mxu0 %v1075
        %1108 = vmatprep.subr.mxu0 0.0
        %1109 = vmatpush1.msra.mxu0 0.0
        %1110 = vmatprep.subr.mxu0 0.0
        %1111 = vmatpush1.msra.mxu0 0.0
        %1112 = vmatprep.subr.mxu0 0.0
        %1113 = vmatpush1.msra.mxu0 0.0
        %1114 = vmatprep.subr.mxu0 0.0
        %1115 = vmatpush1.msra.mxu0 0.0
        %1116 = vmatprep.subr.mxu0 0.0
        %1117 = vmatpush1.msra.mxu0 0.0
        %1118 = vmatprep.subr.mxu0 0.0
        %1119 = vmatpush1.msra.mxu0 0.0
        %1120 = vmatprep.subr.mxu0 0.0
        %1121 = vmatpush1.msra.mxu0 0.0
        %1122 = vmatprep.subr.mxu0 0.0
        %1123 = vmatpush1.msra.mxu0 0.0
        %1124 = vmatprep.subr.mxu0 0.0
        %1125 = vmatpush1.msra.mxu0 0.0
        %1126 = vmatprep.subr.mxu0 0.0
        %1127 = vmatpush1.msra.mxu0 0.0
        %1128 = vmatprep.subr.mxu0 0.0
        %1129 = vmatpush1.msra.mxu0 0.0
        %1130 = vmatprep.subr.mxu0 0.0
        %1131 = vmatpush1.msra.mxu0 0.0
        %1132 = vmatprep.subr.mxu0 0.0
        %1133 = vmatpush1.msra.mxu0 0.0
        %1134 = vmatprep.subr.mxu0 0.0
        %1135 = vmatpush1.msra.mxu0 0.0
        %1136 = vmatprep.subr.mxu0 0.0
        %1137 = vmatpush1.msra.mxu0 0.0
        %1138 = vmatprep.subr.mxu0 0.0
        %1139 = vmatpush1.msra.mxu0 0.0
        %1140 = vmatprep.mubr.f32.mxu0 0.0
        %1141 = vmatmul.mubr.f32.gmra.mrb[0].mxu0 %v1051
        %v1142 = vpop.f32.mrb[0].mxu0
        %v1143 = vadd.f32 0.0, %v1142
        %v1144 = vpop.f32.mrb[0].mxu0
        %1145 = vmatprep.mubr.f32.mxu0 0.0
        %1146 = vmatmul.mubr.f32.gmra.mrb[0].mxu0 %v1052
        %v1147 = vpop.f32.mrb[0].mxu0
        %v1148 = vadd.f32 0.0, %v1147
        %v1149 = vpop.f32.mrb[0].mxu0
        %1150 = vmatprep.mubr.f32.mxu0 0.0
        %1151 = vmatmul.mubr.f32.gmra.mrb[0].mxu0 %v1053
        %v1152 = vpop.f32.mrb[0].mxu0
        %v1153 = vadd.f32 0.0, %v1152
        %v1154 = vpop.f32.mrb[0].mxu0
        %1155 = vmatprep.mubr.f32.mxu0 0.0
        %1156 = vmatmul.mubr.f32.gmra.mrb[0].mxu0 %v1054
        %v1157 = vpop.f32.mrb[0].mxu0
        %v1158 = vadd.f32 0.0, %v1157
        %v1159 = vpop.f32.mrb[0].mxu0
        %1160 = vmatprep.mubr.f32.mxu0 0.0
        %1161 = vmatmul.mubr.f32.gmra.mrb[0].mxu0 %v1055
        %v1162 = vpop.f32.mrb[0].mxu0
        %v1163 = vadd.f32 0.0, %v1162
        %v1164 = vpop.f32.mrb[0].mxu0
        %1165 = vmatprep.mubr.f32.mxu0 0.0
        %1166 = vmatmul.mubr.f32.gmra.mrb[0].mxu0 %v1056
        %v1167 = vpop.f32.mrb[0].mxu0
        %v1168 = vadd.f32 0.0, %v1167
        %v1169 = vpop.f32.mrb[0].mxu0
        %1170 = vmatprep.mubr.f32.mxu0 0.0
        %1171 = vmatmul.mubr.f32.gmra.mrb[0].mxu0 %v1057
        %v1172 = vpop.f32.mrb[0].mxu0
        %v1173 = vadd.f32 0.0, %v1172
        %v1174 = vpop.f32.mrb[0].mxu0
        %1175 = vmatprep.mubr.f32.mxu0 0.0
        %1176 = vmatmul.mubr.f32.gmra.mrb[0].mxu0 %v1058
        %v1177 = vpop.f32.mrb[0].mxu0
        %v1178 = vadd.f32 0.0, %v1177
        %v1179 = vpop.f32.mrb[0].mxu0
        %1180 = vdwg.mxu0
        %1181 = vmatprep.subr.mxu0 0.0
        %1182 = vmatpush1.msra.mxu0 %v1035
        %1183 = vmatprep.subr.mxu0 0.0
        %1184 = vmatpush1.msra.mxu0 %v1036
        %1185 = vmatprep.subr.mxu0 0.0
        %1186 = vmatpush1.msra.mxu0 %v1037
        %1187 = vmatprep.subr.mxu0 0.0
        %1188 = vmatpush1.msra.mxu0 %v1038
        %1189 = vmatprep.subr.mxu0 0.0
        %1190 = vmatpush1.msra.mxu0 %v1039
        %1191 = vmatprep.subr.mxu0 0.0
        %1192 = vmatpush1.msra.mxu0 %v1040
        %1193 = vmatprep.subr.mxu0 0.0
        %1194 = vmatpush1.msra.mxu0 %v1041
        %1195 = vmatprep.subr.mxu0 0.0
        %1196 = vmatpush1.msra.mxu0 %v1042
        %1197 = vmatprep.subr.mxu0 0.0
        %1198 = vmatpush1.msra.mxu0 %v1043
        %1199 = vmatprep.subr.mxu0 0.0
        %1200 = vmatpush1.msra.mxu0 %v1044
        %1201 = vmatprep.subr.mxu0 0.0
        %1202 = vmatpush1.msra.mxu0 %v1045
        %1203 = vmatprep.subr.mxu0 0.0
        %1204 = vmatpush1.msra.mxu0 %v1046
        %1205 = vmatprep.subr.mxu0 0.0
        %1206 = vmatpush1.msra.mxu0 %v1047
        %1207 = vmatprep.subr.mxu0 0.0
        %1208 = vmatpush1.msra.mxu0 %v1048
        %1209 = vmatprep.subr.mxu0 0.0
        %1210 = vmatpush1.msra.mxu0 %v1049
        %1211 = vmatprep.subr.mxu0 0.0
        %1212 = vmatpush1.msra.mxu0 %v1050
        %1213 = vmatprep.subr.mxu0 0.0
        %1214 = vmatpush1.msra.mxu0 0.0
        %1215 = vmatprep.subr.mxu0 0.0
        %1216 = vmatpush1.msra.mxu0 0.0
        %1217 = vmatprep.subr.mxu0 0.0
        %1218 = vmatpush1.msra.mxu0 0.0
        %1219 = vmatprep.subr.mxu0 0.0
        %1220 = vmatpush1.msra.mxu0 0.0
        %1221 = vmatprep.subr.mxu0 0.0
        %1222 = vmatpush1.msra.mxu0 0.0
        %1223 = vmatprep.subr.mxu0 0.0
        %1224 = vmatpush1.msra.mxu0 0.0
        %1225 = vmatprep.subr.mxu0 0.0
        %1226 = vmatpush1.msra.mxu0 0.0
        %1227 = vmatprep.subr.mxu0 0.0
        %1228 = vmatpush1.msra.mxu0 0.0
        %1229 = vmatprep.subr.mxu0 0.0
        %1230 = vmatpush1.msra.mxu0 0.0
        %1231 = vmatprep.subr.mxu0 0.0
        %1232 = vmatpush1.msra.mxu0 0.0
        %1233 = vmatprep.subr.mxu0 0.0
        %1234 = vmatpush1.msra.mxu0 0.0
        %1235 = vmatprep.subr.mxu0 0.0
        %1236 = vmatpush1.msra.mxu0 0.0
        %1237 = vmatprep.subr.mxu0 0.0
        %1238 = vmatpush1.msra.mxu0 0.0
        %1239 = vmatprep.subr.mxu0 0.0
        %1240 = vmatpush1.msra.mxu0 0.0
        %1241 = vmatprep.subr.mxu0 0.0
        %1242 = vmatpush1.msra.mxu0 0.0
        %1243 = vmatprep.subr.mxu0 0.0
        %1244 = vmatpush1.msra.mxu0 0.0
        %1245 = vmatprep.mubr.f32.mxu0 0.0
        %1246 = vmatmul.mubr.f32.gmra.mrb[0].mxu0 %v1026
        %v1247 = vpop.f32.mrb[0].mxu0
        %v1248 = vadd.f32 %v1143, %v1247
        %v1249 = vpop.f32.mrb[0].mxu0
        %1250 = vmatprep.mubr.f32.mxu0 0.0
        %1251 = vmatmul.mubr.f32.gmra.mrb[0].mxu0 %v1027
        %v1252 = vpop.f32.mrb[0].mxu0
        %v1253 = vadd.f32 %v1148, %v1252
        %v1254 = vpop.f32.mrb[0].mxu0
        %1255 = vmatprep.mubr.f32.mxu0 0.0
        %1256 = vmatmul.mubr.f32.gmra.mrb[0].mxu0 %v1028
        %v1257 = vpop.f32.mrb[0].mxu0
        %v1258 = vadd.f32 %v1153, %v1257
        %v1259 = vpop.f32.mrb[0].mxu0
        %1260 = vmatprep.mubr.f32.mxu0 0.0
        %1261 = vmatmul.mubr.f32.gmra.mrb[0].mxu0 %v1029
        %v1262 = vpop.f32.mrb[0].mxu0
        %v1263 = vadd.f32 %v1158, %v1262
        %v1264 = vpop.f32.mrb[0].mxu0
        %1265 = vmatprep.mubr.f32.mxu0 0.0
        %1266 = vmatmul.mubr.f32.gmra.mrb[0].mxu0 %v1030
        %v1267 = vpop.f32.mrb[0].mxu0
        %v1268 = vadd.f32 %v1163, %v1267
        %v1269 = vpop.f32.mrb[0].mxu0
        %1270 = vmatprep.mubr.f32.mxu0 0.0
        %1271 = vmatmul.mubr.f32.gmra.mrb[0].mxu0 %v1031
        %v1272 = vpop.f32.mrb[0].mxu0
        %v1273 = vadd.f32 %v1168, %v1272
        %v1274 = vpop.f32.mrb[0].mxu0
        %1275 = vmatprep.mubr.f32.mxu0 0.0
        %1276 = vmatmul.mubr.f32.gmra.mrb[0].mxu0 %v1032
        %v1277 = vpop.f32.mrb[0].mxu0
        %v1278 = vadd.f32 %v1173, %v1277
        %v1279 = vpop.f32.mrb[0].mxu0
        %1280 = vmatprep.mubr.f32.mxu0 0.0
        %1281 = vmatmul.mubr.f32.gmra.mrb[0].mxu0 %v1033
        %v1282 = vpop.f32.mrb[0].mxu0
        %v1283 = vadd.f32 %v1178, %v1282
        %v1284 = vpop.f32.mrb[0].mxu0
        %1285 = vdwg.mxu0
        %v1286 = vlaneseq
        %v1287 = vshrl.u32 %v1286, 7
        %v1288 = vsub.s32 0, %v1287
        %v1289 = vrot.slane %v1025, %v1288
        %v1290 = vadd.f32 %v1248, %v1289
        %v1291 = vadd.f32 %v1253, %v1289
        %v1292 = vadd.f32 %v1258, %v1289
        %v1293 = vadd.f32 %v1263, %v1289
        %v1294 = vadd.f32 %v1268, %v1289
        %v1295 = vadd.f32 %v1273, %v1289
        %v1296 = vadd.f32 %v1278, %v1289
        %v1297 = vadd.f32 %v1283, %v1289
        %v1298 = vmax.f32 %v1290, 0.0
        %v1299 = vmax.f32 %v1291, 0.0
        %v1300 = vmax.f32 %v1292, 0.0
        %v1301 = vmax.f32 %v1293, 0.0
        %v1302 = vmax.f32 %v1294, 0.0
        %v1303 = vmax.f32 %v1295, 0.0
        %v1304 = vmax.f32 %v1296, 0.0
        %v1305 = vmax.f32 %v1297, 0.0
        %v1306 = vlaneseq
        %v1307 = vshrl.u32 %v1306, 7
        %v1308 = vsub.s32 1, %v1307
        %v1309 = vrot.slane %v1025, %v1308
        %v1310 = vmul.f32 %v1298, %v1309
        %v1311 = vmul.f32 %v1299, %v1309
        %v1312 = vmul.f32 %v1300, %v1309
        %v1313 = vmul.f32 %v1301, %v1309
        %v1314 = vmul.f32 %v1302, %v1309
        %v1315 = vmul.f32 %v1303, %v1309
        %v1316 = vmul.f32 %v1304, %v1309
        %v1317 = vmul.f32 %v1305, %v1309
        %v1318 = vlaneseq
        %v1319 = vshrl.u32 %v1318, 7
        %v1320 = vsub.s32 2, %v1319
        %v1321 = vrot.slane %v1025, %v1320
        %v1322 = vadd.f32 %v1310, %v1321
        %v1323 = vadd.f32 %v1311, %v1321
        %v1324 = vadd.f32 %v1312, %v1321
        %v1325 = vadd.f32 %v1313, %v1321
        %v1326 = vadd.f32 %v1314, %v1321
        %v1327 = vadd.f32 %v1315, %v1321
        %v1328 = vadd.f32 %v1316, %v1321
        %v1329 = vadd.f32 %v1317, %v1321
        %s1330 = scalar_lea.vmem %s3, 128
        %v1331 = vld [vmem:[%s1330] sm:$0xff]
        %v1332 = vld [vmem:[%s1330 + $0x8] sm:$0xff]
        %v1333 = vld [vmem:[%s1330 + $0x10] sm:$0xff]
        %v1334 = vld [vmem:[%s1330 + $0x18] sm:$0xff]
        %v1335 = vld [vmem:[%s1330 + $0x20] sm:$0xff]
        %v1336 = vld [vmem:[%s1330 + $0x28] sm:$0xff]
        %v1337 = vld [vmem:[%s1330 + $0x30] sm:$0xff]
        %v1338 = vld [vmem:[%s1330 + $0x38] sm:$0xff]
        %v1339 = vld [vmem:[%s1330 + $0x40] sm:$0xff]
        %v1340 = vld [vmem:[%s1330 + $0x48] sm:$0xff]
        %v1341 = vld [vmem:[%s1330 + $0x50] sm:$0xff]
        %v1342 = vld [vmem:[%s1330 + $0x58] sm:$0xff]
        %v1343 = vld [vmem:[%s1330 + $0x60] sm:$0xff]
        %v1344 = vld [vmem:[%s1330 + $0x68] sm:$0xff]
        %v1345 = vld [vmem:[%s1330 + $0x70] sm:$0xff]
        %v1346 = vld [vmem:[%s1330 + $0x78] sm:$0xff]
        %v1347 = vlaneseq
        %v1348 = vshrl.u32 %v1347, 7
        %v1349 = vsub.s32 3, %v1348
        %v1350 = vrot.slane %v1025, %v1349
        %1351 = vmatprep.subr.mxu0 0.0
        %1352 = vmatpush1.msra.mxu0 %v1331
        %1353 = vmatprep.subr.mxu0 0.0
        %1354 = vmatpush1.msra.mxu0 %v1332
        %1355 = vmatprep.subr.mxu0 0.0
        %1356 = vmatpush1.msra.mxu0 %v1333
        %1357 = vmatprep.subr.mxu0 0.0
        %1358 = vmatpush1.msra.mxu0 %v1334
        %1359 = vmatprep.subr.mxu0 0.0
        %1360 = vmatpush1.msra.mxu0 %v1335
        %1361 = vmatprep.subr.mxu0 0.0
        %1362 = vmatpush1.msra.mxu0 %v1336
        %1363 = vmatprep.subr.mxu0 0.0
        %1364 = vmatpush1.msra.mxu0 %v1337
        %1365 = vmatprep.subr.mxu0 0.0
        %1366 = vmatpush1.msra.mxu0 %v1338
        %1367 = vmatprep.subr.mxu0 0.0
        %1368 = vmatpush1.msra.mxu0 %v1339
        %1369 = vmatprep.subr.mxu0 0.0
        %1370 = vmatpush1.msra.mxu0 %v1340
        %1371 = vmatprep.subr.mxu0 0.0
        %1372 = vmatpush1.msra.mxu0 %v1341
        %1373 = vmatprep.subr.mxu0 0.0
        %1374 = vmatpush1.msra.mxu0 %v1342
        %1375 = vmatprep.subr.mxu0 0.0
        %1376 = vmatpush1.msra.mxu0 %v1343
        %1377 = vmatprep.subr.mxu0 0.0
        %1378 = vmatpush1.msra.mxu0 %v1344
        %1379 = vmatprep.subr.mxu0 0.0
        %1380 = vmatpush1.msra.mxu0 %v1345
        %1381 = vmatprep.subr.mxu0 0.0
        %1382 = vmatpush1.msra.mxu0 %v1346
        %1383 = vmatprep.subr.mxu0 0.0
        %1384 = vmatpush1.msra.mxu0 0.0
        %1385 = vmatprep.subr.mxu0 0.0
        %1386 = vmatpush1.msra.mxu0 0.0
        %1387 = vmatprep.subr.mxu0 0.0
        %1388 = vmatpush1.msra.mxu0 0.0
        %1389 = vmatprep.subr.mxu0 0.0
        %1390 = vmatpush1.msra.mxu0 0.0
        %1391 = vmatprep.subr.mxu0 0.0
        %1392 = vmatpush1.msra.mxu0 0.0
        %1393 = vmatprep.subr.mxu0 0.0
        %1394 = vmatpush1.msra.mxu0 0.0
        %1395 = vmatprep.subr.mxu0 0.0
        %1396 = vmatpush1.msra.mxu0 0.0
        %1397 = vmatprep.subr.mxu0 0.0
        %1398 = vmatpush1.msra.mxu0 0.0
        %1399 = vmatprep.subr.mxu0 0.0
        %1400 = vmatpush1.msra.mxu0 0.0
        %1401 = vmatprep.subr.mxu0 0.0
        %1402 = vmatpush1.msra.mxu0 0.0
        %1403 = vmatprep.subr.mxu0 0.0
        %1404 = vmatpush1.msra.mxu0 0.0
        %1405 = vmatprep.subr.mxu0 0.0
        %1406 = vmatpush1.msra.mxu0 0.0
        %1407 = vmatprep.subr.mxu0 0.0
        %1408 = vmatpush1.msra.mxu0 0.0
        %1409 = vmatprep.subr.mxu0 0.0
        %1410 = vmatpush1.msra.mxu0 0.0
        %1411 = vmatprep.subr.mxu0 0.0
        %1412 = vmatpush1.msra.mxu0 0.0
        %1413 = vmatprep.subr.mxu0 0.0
        %1414 = vmatpush1.msra.mxu0 0.0
        %1415 = vmatprep.mubr.f32.mxu0 0.0
        %1416 = vmatmul.mubr.f32.gmra.mrb[0].mxu0 %v1051
        %v1417 = vpop.f32.mrb[0].mxu0
        %v1418 = vadd.f32 %v1350, %v1417
        %v1419 = vpop.f32.mrb[0].mxu0
        %1420 = vmatprep.mubr.f32.mxu0 0.0
        %1421 = vmatmul.mubr.f32.gmra.mrb[0].mxu0 %v1052
        %v1422 = vpop.f32.mrb[0].mxu0
        %v1423 = vadd.f32 %v1350, %v1422
        %v1424 = vpop.f32.mrb[0].mxu0
        %1425 = vmatprep.mubr.f32.mxu0 0.0
        %1426 = vmatmul.mubr.f32.gmra.mrb[0].mxu0 %v1053
        %v1427 = vpop.f32.mrb[0].mxu0
        %v1428 = vadd.f32 %v1350, %v1427
        %v1429 = vpop.f32.mrb[0].mxu0
        %1430 = vmatprep.mubr.f32.mxu0 0.0
        %1431 = vmatmul.mubr.f32.gmra.mrb[0].mxu0 %v1054
        %v1432 = vpop.f32.mrb[0].mxu0
        %v1433 = vadd.f32 %v1350, %v1432
        %v1434 = vpop.f32.mrb[0].mxu0
        %1435 = vmatprep.mubr.f32.mxu0 0.0
        %1436 = vmatmul.mubr.f32.gmra.mrb[0].mxu0 %v1055
        %v1437 = vpop.f32.mrb[0].mxu0
        %v1438 = vadd.f32 %v1350, %v1437
        %v1439 = vpop.f32.mrb[0].mxu0
        %1440 = vmatprep.mubr.f32.mxu0 0.0
        %1441 = vmatmul.mubr.f32.gmra.mrb[0].mxu0 %v1056
        %v1442 = vpop.f32.mrb[0].mxu0
        %v1443 = vadd.f32 %v1350, %v1442
        %v1444 = vpop.f32.mrb[0].mxu0
        %1445 = vmatprep.mubr.f32.mxu0 0.0
        %1446 = vmatmul.mubr.f32.gmra.mrb[0].mxu0 %v1057
        %v1447 = vpop.f32.mrb[0].mxu0
        %v1448 = vadd.f32 %v1350, %v1447
        %v1449 = vpop.f32.mrb[0].mxu0
        %1450 = vmatprep.mubr.f32.mxu0 0.0
        %1451 = vmatmul.mubr.f32.gmra.mrb[0].mxu0 %v1058
        %v1452 = vpop.f32.mrb[0].mxu0
        %v1453 = vadd.f32 %v1350, %v1452
        %v1454 = vpop.f32.mrb[0].mxu0
        %1455 = vdwg.mxu0
        %v1456 = vadd.f32 %v1322, %v1418
        %v1457 = vadd.f32 %v1323, %v1423
        %v1458 = vadd.f32 %v1324, %v1428
        %v1459 = vadd.f32 %v1325, %v1433
        %v1460 = vadd.f32 %v1326, %v1438
        %v1461 = vadd.f32 %v1327, %v1443
        %v1462 = vadd.f32 %v1328, %v1448
        %v1463 = vadd.f32 %v1329, %v1453
        %v1464 = vmax.f32 %v1456, 0.0
        %v1465 = vmax.f32 %v1457, 0.0
        %v1466 = vmax.f32 %v1458, 0.0
        %v1467 = vmax.f32 %v1459, 0.0
        %v1468 = vmax.f32 %v1460, 0.0
        %v1469 = vmax.f32 %v1461, 0.0
        %v1470 = vmax.f32 %v1462, 0.0
        %v1471 = vmax.f32 %v1463, 0.0
        %1472 = vst [vmem:[#allocation2 + $0x4] sm:$0xff] %v1464
        %1473 = vst [vmem:[#allocation2 + $0xc] sm:$0xff] %v1465
        %1474 = vst [vmem:[#allocation2 + $0x1c] sm:$0xff] %v1466
        %1475 = vst [vmem:[#allocation2 + $0x24] sm:$0xff] %v1467
        %1476 = vst [vmem:[#allocation2 + $0x34] sm:$0xff] %v1468
        %1477 = vst [vmem:[#allocation2 + $0x3c] sm:$0xff] %v1469
        %1478 = vst [vmem:[#allocation2 + $0x4c] sm:$0xff] %v1470
        %1479 = vst [vmem:[#allocation2 + $0x54] sm:$0xff] %v1471
        %v1480 = vld [vmem:[#allocation2 + $0x4] sm:$0xff]
        %v1481 = vld [vmem:[#allocation2 + $0xc] sm:$0xff]
        %v1482 = vld [vmem:[#allocation2 + $0x1c] sm:$0xff]
        %v1483 = vld [vmem:[#allocation2 + $0x24] sm:$0xff]
        %v1484 = vld [vmem:[#allocation2 + $0x34] sm:$0xff]
        %v1485 = vld [vmem:[#allocation2 + $0x3c] sm:$0xff]
        %v1486 = vld [vmem:[#allocation2 + $0x4c] sm:$0xff]
        %v1487 = vld [vmem:[#allocation2 + $0x54] sm:$0xff]
        %1488 = vst [vmem:[%s208] sm:$0xff] %v1480
        %1489 = vst [vmem:[%s208 + $0x8] sm:$0xff] %v1481
        %1490 = vst [vmem:[%s208 + $0x10] sm:$0xff] %v1482
        %1491 = vst [vmem:[%s208 + $0x18] sm:$0xff] %v1483
        %1492 = vst [vmem:[%s208 + $0x20] sm:$0xff] %v1484
        %1493 = vst [vmem:[%s208 + $0x28] sm:$0xff] %v1485
        %1494 = vst [vmem:[%s208 + $0x30] sm:$0xff] %v1486
        %1495 = vst [vmem:[%s208 + $0x38] sm:$0xff] %v1487
        %s1496 = sand.u32 %s116, 1
        %s1497 = scalar_lea.sflag [#allocation5], %s1496
        %s1498 = sand.u32 %s116, 1
        %s1499 = smul.addr %s1498, 64
        %s1500 = scalar_lea.vmem [#allocation6], %s1499
        // Predicated region
        $region41: #{tpu_custom_call.1} parent=35 // pred_check
          %p1501 = pneg %p126
        $region42: #{tpu_custom_call.1} parent=35 // pred_check_branch
          %1503 = sbr.rel (%p1501) target = $region44
        $region43: #{tpu_custom_call.1} parent=35 // pred_region
          %s1504 = smul.u32 4, %s19
          %s1506 = ssub.s32 1024, 1024
          %1507 = vsyncadd %s1497, %s1506
          %s1508 = smul.addr %s1504, 2
          %s1509 = smul.addr %s1508, 128
          %s1510 = scalar_lea.hbm %s4, %s1509
          %s1511 = sshll.u32 %s1500, 4
          %s1512 = int_to_ptr.vmem [resolvable:$true] %s1511
          %1517 = dma.vmem_to_hbm [thread:$0]  %s1512, 1024, %s1510, %s1497, 128, 128, 8
        $region44: #{tpu_custom_call.1} parent=35 // pred_fallthru
          _
      $region36: #{tpu_custom_call.1} parent=5 // pred_fallthru
        _
      %p1518 = scmp.le.s32.totalorder 2, %s14
      // Predicated region
      $region45: #{tpu_custom_call.1} parent=5 // pred_check
        %p1519 = pneg %p1518
      $region46: #{tpu_custom_call.1} parent=5 // pred_check_branch
        %1521 = sbr.rel (%p1519) target = $region48
      $region47: #{tpu_custom_call.1} parent=5 // pred_region
        %s1522 = ssub.s32 %s14, 2
        // Predicated region
        $region49: #{tpu_custom_call.1} parent=47 // pred_check
          %p1523 = pneg %p132
        $region50: #{tpu_custom_call.1} parent=47 // pred_check_branch
          %1525 = sbr.rel (%p1523) target = $region52
        $region51: #{tpu_custom_call.1} parent=47 // pred_region
          %s1526 = sand.u32 %s117, 1
          %s1527 = scalar_lea.sflag [#allocation5], %s1526
          %s1528 = sand.u32 %s117, 1
          %s1529 = smul.addr %s1528, 64
          %s1530 = scalar_lea.vmem [#allocation6], %s1529
          %1531 = dma.done %s1527, 1024
        $region52: #{tpu_custom_call.1} parent=47 // pred_fallthru
          _
      $region48: #{tpu_custom_call.1} parent=5 // pred_fallthru
        _
    $region6: #{tpu_custom_call.1} parent=1 // loop_footer
      %s18 = sadd.s32 1, %s14
    $region7: #{tpu_custom_call.1} parent=1 // loop_footer_branch
      %13 = sbr.rel target = $region3
    $region8: #{tpu_custom_call.1} parent=1 // loop_exit
      _
    %1532 = vsyncpa [#allocation4], 1
    %s1533 = scalar_lea.sflag [#allocation4], 1
    %1534 = vsyncpa %s1533, 1
    %1535 = vsyncpa [#allocation5], 1
    %s1536 = scalar_lea.sflag [#allocation5], 1
    %1537 = vsyncpa %s1536, 1

</llo_original>
